<compile_context>
chip_gen: v7x
topology: tpu7x:2x2x1
jax: 0.10.0
libtpu: 0.0.40
codegen_flags: <defaults>
</compile_context>

<pallas_src>
import numpy as np

import jax
import jax.numpy as jnp
from jax.experimental import pallas as pl
from jax.experimental.pallas import tpu as pltpu


# ----------------------------------------------------------------------------
# Fused Pallas kernel: conv1+BN+ReLU+pool  ->  conv2+BN+ReLU+pool
# ----------------------------------------------------------------------------
def _act_fused_kernel(x_ref, w1_ref, b1_ref, w2_ref, b2_ref, sel_ref, o_ref):
    """x_ref:   (B_t, Cin, W)  batch tile at one (already H-pooled) input row
       w1_ref:  (K, C1, Cin)   conv1 weights, BN1 scale folded in
       b1_ref:  (C1, 1)        conv1 bias + BN1 (folded); broadcasts over lanes
       w2_ref:  (K, C2, C1)    conv2 weights, BN2 scale folded in
       b2_ref:  (C2, 1)
       sel_ref: (P, Q)         0/1 gather matrix: lane b*W+4*wq -> column b*W2p+wq
       o_ref:   (C2, Q)        Q = B_t*W2p, channel-major pooled layer-2 output
    """
    B_t, Cin, W = x_ref.shape
    K, C1, _ = w1_ref.shape
    C2 = w2_ref.shape[1]
    F = B_t * W                   # flattened lane width (batch-major within the tile)
    N1 = F - (K - 1)              # layer-1 conv width (incl. unused cross-row cols)
    N2 = N1 - 1 - 2 * (K - 1)     # layer-2 conv width in un-compacted pooled lanes

    # Channel-major, lane-dense slab: (Cin sublanes, B_t*W lanes).
    if B_t == 1:
        xf = x_ref[0]
    else:
        xf = jnp.transpose(x_ref[...], (1, 0, 2)).reshape(Cin, F)

    # ---- conv1: K accumulated matmuls over shifted lane slices (no im2col) ----
    acc1 = jnp.zeros((C1, N1), jnp.float32)
    for k in range(K):                                        # K is small & static
        acc1 = acc1 + jnp.dot(w1_ref[k], xf[:, k:k + N1],
                              preferred_element_type=jnp.float32)
    y = jnp.maximum(acc1 + b1_ref[...], 0.0)                  # folded BN bias + ReLU
    # MaxPool2d((1,2),2) along W, kept un-compacted: value for wp sits at lane 2*wp.
    m1 = jnp.maximum(y[:, :N1 - 1], y[:, 1:N1])               # (C1, N1-1)

    # ---- conv2: shifts become 2*k in the un-compacted pooled lane space ----
    acc2 = jnp.zeros((C2, N2), jnp.float32)
    for k in range(K):
        acc2 = acc2 + jnp.dot(w2_ref[k], m1[:, 2 * k:2 * k + N2],
                              preferred_element_type=jnp.float32)
    z = jnp.maximum(acc2 + b2_ref[...], 0.0)                  # (C2, N2)
    m2 = jnp.maximum(z[:, :N2 - 2], z[:, 2:N2])               # value for wq at lane 4*wq

    # ---- compact lanes b*W+4*wq -> columns b*W2p+wq with one selection matmul ----
    # (MXU is otherwise idle; HIGHEST keeps the 0/1 gather numerically exact.)
    o_ref[...] = jnp.dot(m2, sel_ref[...],
                         preferred_element_type=jnp.float32,
                         precision=jax.lax.Precision.HIGHEST).astype(o_ref.dtype)


# ----------------------------------------------------------------------------
# ActNetwork forward: one pallas_call, all layout work done by BlockSpecs
# ----------------------------------------------------------------------------
def _largest_divisor_leq(n, cap):
    cap = max(1, min(cap, n))
    for d in range(cap, 0, -1):
        if n % d == 0:
            return d
    return 1


def act_network_forward(x_nchw, params, in_features):
    w1, b1 = params["w1"], params["b1"]        # (K, C1, Cin), (C1, 1)
    w2, b2 = params["w2"], params["b2"]        # (K, C2, C1), (C2, 1)
    B, Cin, H, W = x_nchw.shape
    K, C1, _ = w1.shape
    C2 = w2.shape[1]

    # Shape trace of Conv2d(1,K) VALID -> MaxPool2d((1,2), stride=2), applied twice.
    W1 = W - K + 1
    W1p = (W1 - 2) // 2 + 1
    W2 = W1p - K + 1
    W2p = (W2 - 2) // 2 + 1
    H1 = (H - 1) // 2 + 1
    H2 = (H1 - 1) // 2 + 1
    assert W1 >= 2 and W2 >= 2, "input width too small for two conv+pool stages"
    assert in_features == C2 * H2 * W2p, "in_features must match the conv output size"

    # Batch tile: give >=2 parallel grid steps when B>=2 (v7x has 2 TensorCores),
    # capped at 8 images/tile so the lane slab & selection matrix stay small.
    B_t = _largest_divisor_leq(B, min(8, max(1, B // 2)))
    nB = B // B_t
    F = B_t * W
    N1 = F - (K - 1)
    N2 = N1 - 1 - 2 * (K - 1)
    P = N2 - 2
    Q = B_t * W2p

    # Window-fit invariants: conv-2 / pool-2 windows must stay inside each row.
    assert 2 * (K - 1) + N2 <= N1 - 1
    assert (B_t - 1) * W + 2 * (W2 - 1) < N2
    assert (B_t - 1) * W + 4 * (W2p - 1) < P

    # 0/1 gather matrix: lane b*W + 4*wq  ->  column b*W2p + wq  (built on host).
    sel_np = np.zeros((P, Q), np.float32)
    for b in range(B_t):
        for wq in range(W2p):
            sel_np[b * W + 4 * wq, b * W2p + wq] = 1.0
    sel = jnp.asarray(sel_np)

    out = pl.pallas_call(
        _act_fused_kernel,
        out_shape=jax.ShapeDtypeStruct((nB, H2, C2, Q), jnp.float32),
        grid=(nB, H2),
        in_specs=[
            # h%4==0 row selection folded into the index_map: the block is taken
            # straight out of the NCHW input at H offset 4*h2 (no wrapper copy).
            pl.BlockSpec((B_t, Cin, None, W), lambda bi, h2: (bi, 0, 4 * h2, 0)),
            pl.BlockSpec((K, C1, Cin), lambda bi, h2: (0, 0, 0)),
            pl.BlockSpec((C1, 1), lambda bi, h2: (0, 0)),
            pl.BlockSpec((K, C2, C1), lambda bi, h2: (0, 0, 0)),
            pl.BlockSpec((C2, 1), lambda bi, h2: (0, 0)),
            pl.BlockSpec((P, Q), lambda bi, h2: (0, 0)),
        ],
        out_specs=pl.BlockSpec((None, None, C2, Q), lambda bi, h2: (bi, h2, 0, 0)),
        compiler_params=pltpu.CompilerParams(
            dimension_semantics=("parallel", "parallel")),
    )(x_nchw, w1, b1, w2, b2, sel)

    # (nB, H2, C2, B_t*W2p) -> (B, C2, H2, W2p) -> x.view(-1, in_features).
    # Tiny output; this reorder is free plumbing in the wrapper.
    out = out.reshape(nB, H2, C2, B_t, W2p)
    out = jnp.transpose(out, (0, 3, 2, 1, 4)).reshape(B, C2, H2, W2p)
    return out.reshape(-1, in_features)


# ----------------------------------------------------------------------------
# Deterministic parameter init + Conv/BN folding (eval-mode BN)
# ----------------------------------------------------------------------------
def init_raw_params(key, cin, c1, c2, K):
    ks = jax.random.split(key, 12)

    def conv_w(k, cout, cin_):
        return jax.random.normal(k, (cout, cin_, 1, K), jnp.float32) / jnp.sqrt(cin_ * K)

    return {
        "conv1_w": conv_w(ks[0], c1, cin),
        "conv1_b": 0.1 * jax.random.normal(ks[1], (c1,), jnp.float32),
        "bn1_gamma": 1.0 + 0.1 * jax.random.normal(ks[2], (c1,), jnp.float32),
        "bn1_beta": 0.1 * jax.random.normal(ks[3], (c1,), jnp.float32),
        "bn1_mean": 0.1 * jax.random.normal(ks[4], (c1,), jnp.float32),
        "bn1_var": jax.nn.softplus(jax.random.normal(ks[5], (c1,), jnp.float32)) + 0.5,
        "conv2_w": conv_w(ks[6], c2, c1),
        "conv2_b": 0.1 * jax.random.normal(ks[7], (c2,), jnp.float32),
        "bn2_gamma": 1.0 + 0.1 * jax.random.normal(ks[8], (c2,), jnp.float32),
        "bn2_beta": 0.1 * jax.random.normal(ks[9], (c2,), jnp.float32),
        "bn2_mean": 0.1 * jax.random.normal(ks[10], (c2,), jnp.float32),
        "bn2_var": jax.nn.softplus(jax.random.normal(ks[11], (c2,), jnp.float32)) + 0.5,
    }


def fold_conv_bn(w_oihw, conv_b, gamma, beta, mean, var, eps=1e-5):
    """Fold conv bias + eval-mode BN into (K, Cout, Cin) weights and (Cout, 1) bias."""
    scale = gamma / jnp.sqrt(var + eps)                    # (Cout,)
    bias = beta + (conv_b - mean) * scale                  # (Cout,)
    w = w_oihw[:, :, 0, :] * scale[:, None, None]          # (Cout, Cin, K)
    w_koc = jnp.transpose(w, (2, 0, 1))                    # (K, Cout, Cin)
    return w_koc, bias[:, None]


# ----------------------------------------------------------------------------
# Pure-JAX reference (mirrors the PyTorch module, BN in eval mode)
# ----------------------------------------------------------------------------
def reference_forward(x, raw, in_features):
    eps = 1e-5

    def conv(x, w, b):
        y = jax.lax.conv_general_dilated(
            x, w, window_strides=(1, 1), padding="VALID",
            dimension_numbers=("NCHW", "OIHW", "NCHW"),
            precision=jax.lax.Precision.HIGHEST)
        return y + b[None, :, None, None]

    def bn(x, g, b, m, v):
        return (x - m[None, :, None, None]) * (
            g[None, :, None, None] / jnp.sqrt(v[None, :, None, None] + eps)
        ) + b[None, :, None, None]

    def pool(x):
        return jax.lax.reduce_window(x, -jnp.inf, jax.lax.max,
                                     (1, 1, 1, 2), (1, 1, 2, 2), "VALID")

    x = pool(jnp.maximum(bn(conv(x, raw["conv1_w"], raw["conv1_b"]),
                            raw["bn1_gamma"], raw["bn1_beta"],
                            raw["bn1_mean"], raw["bn1_var"]), 0.0))
    x = pool(jnp.maximum(bn(conv(x, raw["conv2_w"], raw["conv2_b"]),
                            raw["bn2_gamma"], raw["bn2_beta"],
                            raw["bn2_mean"], raw["bn2_var"]), 0.0))
    return x.reshape(-1, in_features)


if __name__ == "__main__":
    # ActNetwork(conv1_in_channels=4, conv1_out_channels=8, conv2_out_channels=16,
    #            kernel_size_num=5, in_features_size=16*1*13)
    conv1_in, conv1_out, conv2_out, K = 4, 8, 16, 5
    B, H, W = 2, 1, 64
    # width trace: 64 -conv-> 60 -pool-> 30 -conv-> 26 -pool-> 13
    in_features = conv2_out * 1 * 13

    key = jax.random.PRNGKey(0)
    kx, kp = jax.random.split(key)
    x = jax.random.normal(kx, (B, conv1_in, H, W), jnp.float32)

    raw = init_raw_params(kp, conv1_in, conv1_out, conv2_out, K)
    w1, b1 = fold_conv_bn(raw["conv1_w"], raw["conv1_b"], raw["bn1_gamma"],
                          raw["bn1_beta"], raw["bn1_mean"], raw["bn1_var"])
    w2, b2 = fold_conv_bn(raw["conv2_w"], raw["conv2_b"], raw["bn2_gamma"],
                          raw["bn2_beta"], raw["bn2_mean"], raw["bn2_var"])
    params = {"w1": w1, "b1": b1, "w2": w2, "b2": b2}

    fwd = jax.jit(lambda xx, pp: act_network_forward(xx, pp, in_features))
    out = jax.block_until_ready(fwd(x, params))
    assert out.shape == (B, in_features), out.shape

    ref = jax.block_until_ready(reference_forward(x, raw, in_features))
    assert jnp.allclose(out, ref, atol=2e-2, rtol=2e-2), \
        f"max abs err {jnp.max(jnp.abs(out - ref))}"

    print("KERNEL_OK")
</pallas_src>

<mosaic_0001>
module attributes {stable_mosaic.version = 11 : i64} {
  func.func @_act_fused_kernel(%arg0: i32, %arg1: i32, %arg2: memref<1x4x1x64xf32, #tpu.memory_space<vmem>>, %arg3: memref<5x8x4xf32, #tpu.memory_space<vmem>>, %arg4: memref<8x1xf32, #tpu.memory_space<vmem>>, %arg5: memref<5x16x8xf32, #tpu.memory_space<vmem>>, %arg6: memref<16x1xf32, #tpu.memory_space<vmem>>, %arg7: memref<49x13xf32, #tpu.memory_space<vmem>>, %arg8: memref<1x1x16x13xf32, #tpu.memory_space<vmem>>) attributes {dimension_semantics = [#tpu.dimension_semantics<parallel>, #tpu.dimension_semantics<parallel>], iteration_bounds = array<i64: 2, 1>, scalar_prefetch = 0 : i64, scratch_operands = 0 : i64, tpu.core_type = #tpu.core_type<tc>, window_params = [{transform_indices = @transform_0, window_bounds = array<i64: 1, 4, 1, 64>}, {pipeline_mode = #tpu.pipeline_mode<synchronous>, transform_indices = @transform_1, window_bounds = array<i64: 5, 8, 4>}, {pipeline_mode = #tpu.pipeline_mode<synchronous>, transform_indices = @transform_2, window_bounds = array<i64: 8, 1>}, {pipeline_mode = #tpu.pipeline_mode<synchronous>, transform_indices = @transform_3, window_bounds = array<i64: 5, 16, 8>}, {pipeline_mode = #tpu.pipeline_mode<synchronous>, transform_indices = @transform_4, window_bounds = array<i64: 16, 1>}, {pipeline_mode = #tpu.pipeline_mode<synchronous>, transform_indices = @transform_5, window_bounds = array<i64: 49, 13>}, {transform_indices = @transform_6, window_bounds = array<i64: 1, 1, 16, 13>}]} {
    %c0 = arith.constant 0 : index
    %c0_0 = arith.constant 0 : index
    %c0_1 = arith.constant 0 : index
    %c0_2 = arith.constant 0 : index
    %0 = vector.load %arg2[%c0, %c0_0, %c0_1, %c0_2] : memref<1x4x1x64xf32, #tpu.memory_space<vmem>>, vector<1x4x1x64xf32>
    %1 = vector.shape_cast %0 : vector<1x4x1x64xf32> to vector<4x64xf32>
    %cst = arith.constant 0.000000e+00 : f32
    %2 = vector.broadcast %cst : f32 to vector<8x60xf32>
    %c0_3 = arith.constant 0 : index
    %c0_4 = arith.constant 0 : index
    %c0_5 = arith.constant 0 : index
    %3 = vector.load %arg3[%c0_3, %c0_4, %c0_5] : memref<5x8x4xf32, #tpu.memory_space<vmem>>, vector<1x8x4xf32>
    %4 = vector.shape_cast %3 : vector<1x8x4xf32> to vector<8x4xf32>
    %5 = vector.extract_strided_slice %1 {offsets = [0, 0], sizes = [4, 60], strides = [1, 1]} : vector<4x64xf32> to vector<4x60xf32>
    %cst_6 = arith.constant dense<0.000000e+00> : vector<8x60xf32>
    %6 = tpu.matmul %4, %5, %cst_6 {dimension_numbers = #tpu.dot_dimension_numbers<[1], [0], [0], [1], [0, 0, 1, 1], [], []>} : vector<8x4xf32>, vector<4x60xf32>, vector<8x60xf32> -> vector<8x60xf32>
    %7 = arith.addf %2, %6 : vector<8x60xf32>
    %c1 = arith.constant 1 : index
    %c0_7 = arith.constant 0 : index
    %c0_8 = arith.constant 0 : index
    %8 = vector.load %arg3[%c1, %c0_7, %c0_8] : memref<5x8x4xf32, #tpu.memory_space<vmem>>, vector<1x8x4xf32>
    %9 = vector.shape_cast %8 : vector<1x8x4xf32> to vector<8x4xf32>
    %10 = vector.extract_strided_slice %1 {offsets = [0, 1], sizes = [4, 60], strides = [1, 1]} : vector<4x64xf32> to vector<4x60xf32>
    %cst_9 = arith.constant dense<0.000000e+00> : vector<8x60xf32>
    %11 = tpu.matmul %9, %10, %cst_9 {dimension_numbers = #tpu.dot_dimension_numbers<[1], [0], [0], [1], [0, 0, 1, 1], [], []>} : vector<8x4xf32>, vector<4x60xf32>, vector<8x60xf32> -> vector<8x60xf32>
    %12 = arith.addf %7, %11 : vector<8x60xf32>
    %c2 = arith.constant 2 : index
    %c0_10 = arith.constant 0 : index
    %c0_11 = arith.constant 0 : index
    %13 = vector.load %arg3[%c2, %c0_10, %c0_11] : memref<5x8x4xf32, #tpu.memory_space<vmem>>, vector<1x8x4xf32>
    %14 = vector.shape_cast %13 : vector<1x8x4xf32> to vector<8x4xf32>
    %15 = vector.extract_strided_slice %1 {offsets = [0, 2], sizes = [4, 60], strides = [1, 1]} : vector<4x64xf32> to vector<4x60xf32>
    %cst_12 = arith.constant dense<0.000000e+00> : vector<8x60xf32>
    %16 = tpu.matmul %14, %15, %cst_12 {dimension_numbers = #tpu.dot_dimension_numbers<[1], [0], [0], [1], [0, 0, 1, 1], [], []>} : vector<8x4xf32>, vector<4x60xf32>, vector<8x60xf32> -> vector<8x60xf32>
    %17 = arith.addf %12, %16 : vector<8x60xf32>
    %c3 = arith.constant 3 : index
    %c0_13 = arith.constant 0 : index
    %c0_14 = arith.constant 0 : index
    %18 = vector.load %arg3[%c3, %c0_13, %c0_14] : memref<5x8x4xf32, #tpu.memory_space<vmem>>, vector<1x8x4xf32>
    %19 = vector.shape_cast %18 : vector<1x8x4xf32> to vector<8x4xf32>
    %20 = vector.extract_strided_slice %1 {offsets = [0, 3], sizes = [4, 60], strides = [1, 1]} : vector<4x64xf32> to vector<4x60xf32>
    %cst_15 = arith.constant dense<0.000000e+00> : vector<8x60xf32>
    %21 = tpu.matmul %19, %20, %cst_15 {dimension_numbers = #tpu.dot_dimension_numbers<[1], [0], [0], [1], [0, 0, 1, 1], [], []>} : vector<8x4xf32>, vector<4x60xf32>, vector<8x60xf32> -> vector<8x60xf32>
    %22 = arith.addf %17, %21 : vector<8x60xf32>
    %c4 = arith.constant 4 : index
    %c0_16 = arith.constant 0 : index
    %c0_17 = arith.constant 0 : index
    %23 = vector.load %arg3[%c4, %c0_16, %c0_17] : memref<5x8x4xf32, #tpu.memory_space<vmem>>, vector<1x8x4xf32>
    %24 = vector.shape_cast %23 : vector<1x8x4xf32> to vector<8x4xf32>
    %25 = vector.extract_strided_slice %1 {offsets = [0, 4], sizes = [4, 60], strides = [1, 1]} : vector<4x64xf32> to vector<4x60xf32>
    %cst_18 = arith.constant dense<0.000000e+00> : vector<8x60xf32>
    %26 = tpu.matmul %24, %25, %cst_18 {dimension_numbers = #tpu.dot_dimension_numbers<[1], [0], [0], [1], [0, 0, 1, 1], [], []>} : vector<8x4xf32>, vector<4x60xf32>, vector<8x60xf32> -> vector<8x60xf32>
    %27 = arith.addf %22, %26 : vector<8x60xf32>
    %c0_19 = arith.constant 0 : index
    %c0_20 = arith.constant 0 : index
    %28 = vector.load %arg4[%c0_19, %c0_20] : memref<8x1xf32, #tpu.memory_space<vmem>>, vector<8x1xf32>
    %29 = vector.broadcast %28 : vector<8x1xf32> to vector<8x60xf32>
    %30 = arith.addf %27, %29 : vector<8x60xf32>
    %cst_21 = arith.constant 0.000000e+00 : f32
    %31 = vector.broadcast %cst_21 : f32 to vector<8x60xf32>
    %32 = arith.maximumf %30, %31 : vector<8x60xf32>
    %33 = vector.extract_strided_slice %32 {offsets = [0, 0], sizes = [8, 59], strides = [1, 1]} : vector<8x60xf32> to vector<8x59xf32>
    %34 = vector.extract_strided_slice %32 {offsets = [0, 1], sizes = [8, 59], strides = [1, 1]} : vector<8x60xf32> to vector<8x59xf32>
    %35 = arith.maximumf %33, %34 : vector<8x59xf32>
    %cst_22 = arith.constant 0.000000e+00 : f32
    %36 = vector.broadcast %cst_22 : f32 to vector<16x51xf32>
    %c0_23 = arith.constant 0 : index
    %c0_24 = arith.constant 0 : index
    %c0_25 = arith.constant 0 : index
    %37 = vector.load %arg5[%c0_23, %c0_24, %c0_25] : memref<5x16x8xf32, #tpu.memory_space<vmem>>, vector<1x16x8xf32>
    %38 = vector.shape_cast %37 : vector<1x16x8xf32> to vector<16x8xf32>
    %39 = vector.extract_strided_slice %35 {offsets = [0, 0], sizes = [8, 51], strides = [1, 1]} : vector<8x59xf32> to vector<8x51xf32>
    %cst_26 = arith.constant dense<0.000000e+00> : vector<16x51xf32>
    %40 = tpu.matmul %38, %39, %cst_26 {dimension_numbers = #tpu.dot_dimension_numbers<[1], [0], [0], [1], [0, 0, 1, 1], [], []>} : vector<16x8xf32>, vector<8x51xf32>, vector<16x51xf32> -> vector<16x51xf32>
    %41 = arith.addf %36, %40 : vector<16x51xf32>
    %c1_27 = arith.constant 1 : index
    %c0_28 = arith.constant 0 : index
    %c0_29 = arith.constant 0 : index
    %42 = vector.load %arg5[%c1_27, %c0_28, %c0_29] : memref<5x16x8xf32, #tpu.memory_space<vmem>>, vector<1x16x8xf32>
    %43 = vector.shape_cast %42 : vector<1x16x8xf32> to vector<16x8xf32>
    %44 = vector.extract_strided_slice %35 {offsets = [0, 2], sizes = [8, 51], strides = [1, 1]} : vector<8x59xf32> to vector<8x51xf32>
    %cst_30 = arith.constant dense<0.000000e+00> : vector<16x51xf32>
    %45 = tpu.matmul %43, %44, %cst_30 {dimension_numbers = #tpu.dot_dimension_numbers<[1], [0], [0], [1], [0, 0, 1, 1], [], []>} : vector<16x8xf32>, vector<8x51xf32>, vector<16x51xf32> -> vector<16x51xf32>
    %46 = arith.addf %41, %45 : vector<16x51xf32>
    %c2_31 = arith.constant 2 : index
    %c0_32 = arith.constant 0 : index
    %c0_33 = arith.constant 0 : index
    %47 = vector.load %arg5[%c2_31, %c0_32, %c0_33] : memref<5x16x8xf32, #tpu.memory_space<vmem>>, vector<1x16x8xf32>
    %48 = vector.shape_cast %47 : vector<1x16x8xf32> to vector<16x8xf32>
    %49 = vector.extract_strided_slice %35 {offsets = [0, 4], sizes = [8, 51], strides = [1, 1]} : vector<8x59xf32> to vector<8x51xf32>
    %cst_34 = arith.constant dense<0.000000e+00> : vector<16x51xf32>
    %50 = tpu.matmul %48, %49, %cst_34 {dimension_numbers = #tpu.dot_dimension_numbers<[1], [0], [0], [1], [0, 0, 1, 1], [], []>} : vector<16x8xf32>, vector<8x51xf32>, vector<16x51xf32> -> vector<16x51xf32>
    %51 = arith.addf %46, %50 : vector<16x51xf32>
    %c3_35 = arith.constant 3 : index
    %c0_36 = arith.constant 0 : index
    %c0_37 = arith.constant 0 : index
    %52 = vector.load %arg5[%c3_35, %c0_36, %c0_37] : memref<5x16x8xf32, #tpu.memory_space<vmem>>, vector<1x16x8xf32>
    %53 = vector.shape_cast %52 : vector<1x16x8xf32> to vector<16x8xf32>
    %54 = vector.extract_strided_slice %35 {offsets = [0, 6], sizes = [8, 51], strides = [1, 1]} : vector<8x59xf32> to vector<8x51xf32>
    %cst_38 = arith.constant dense<0.000000e+00> : vector<16x51xf32>
    %55 = tpu.matmul %53, %54, %cst_38 {dimension_numbers = #tpu.dot_dimension_numbers<[1], [0], [0], [1], [0, 0, 1, 1], [], []>} : vector<16x8xf32>, vector<8x51xf32>, vector<16x51xf32> -> vector<16x51xf32>
    %56 = arith.addf %51, %55 : vector<16x51xf32>
    %c4_39 = arith.constant 4 : index
    %c0_40 = arith.constant 0 : index
    %c0_41 = arith.constant 0 : index
    %57 = vector.load %arg5[%c4_39, %c0_40, %c0_41] : memref<5x16x8xf32, #tpu.memory_space<vmem>>, vector<1x16x8xf32>
    %58 = vector.shape_cast %57 : vector<1x16x8xf32> to vector<16x8xf32>
    %59 = vector.extract_strided_slice %35 {offsets = [0, 8], sizes = [8, 51], strides = [1, 1]} : vector<8x59xf32> to vector<8x51xf32>
    %cst_42 = arith.constant dense<0.000000e+00> : vector<16x51xf32>
    %60 = tpu.matmul %58, %59, %cst_42 {dimension_numbers = #tpu.dot_dimension_numbers<[1], [0], [0], [1], [0, 0, 1, 1], [], []>} : vector<16x8xf32>, vector<8x51xf32>, vector<16x51xf32> -> vector<16x51xf32>
    %61 = arith.addf %56, %60 : vector<16x51xf32>
    %c0_43 = arith.constant 0 : index
    %c0_44 = arith.constant 0 : index
    %62 = vector.load %arg6[%c0_43, %c0_44] : memref<16x1xf32, #tpu.memory_space<vmem>>, vector<16x1xf32>
    %63 = vector.broadcast %62 : vector<16x1xf32> to vector<16x51xf32>
    %64 = arith.addf %61, %63 : vector<16x51xf32>
    %cst_45 = arith.constant 0.000000e+00 : f32
    %65 = vector.broadcast %cst_45 : f32 to vector<16x51xf32>
    %66 = arith.maximumf %64, %65 : vector<16x51xf32>
    %67 = vector.extract_strided_slice %66 {offsets = [0, 0], sizes = [16, 49], strides = [1, 1]} : vector<16x51xf32> to vector<16x49xf32>
    %68 = vector.extract_strided_slice %66 {offsets = [0, 2], sizes = [16, 49], strides = [1, 1]} : vector<16x51xf32> to vector<16x49xf32>
    %69 = arith.maximumf %67, %68 : vector<16x49xf32>
    %c0_46 = arith.constant 0 : index
    %c0_47 = arith.constant 0 : index
    %70 = vector.load %arg7[%c0_46, %c0_47] : memref<49x13xf32, #tpu.memory_space<vmem>>, vector<49x13xf32>
    %cst_48 = arith.constant dense<0.000000e+00> : vector<16x13xf32>
    %71 = tpu.matmul %69, %70, %cst_48 {dimension_numbers = #tpu.dot_dimension_numbers<[1], [0], [0], [1], [0, 0, 1, 1], [], []>, precision = #tpu.contract_precision<fp32>} : vector<16x49xf32>, vector<49x13xf32>, vector<16x13xf32> -> vector<16x13xf32>
    %c0_49 = arith.constant 0 : index
    %c0_50 = arith.constant 0 : index
    %c0_51 = arith.constant 0 : index
    %c0_52 = arith.constant 0 : index
    %72 = vector.load %arg8[%c0_49, %c0_50, %c0_51, %c0_52] : memref<1x1x16x13xf32, #tpu.memory_space<vmem>>, vector<1x1x16x13xf32>
    %73 = vector.shape_cast %72 : vector<1x1x16x13xf32> to vector<16x13xf32>
    %74 = vector.shape_cast %71 : vector<16x13xf32> to vector<1x1x16x13xf32>
    tpu.vector_store %arg8[%c0_49, %c0_50, %c0_51, %c0_52], %74 {strides = array<i32>} : memref<1x1x16x13xf32, #tpu.memory_space<vmem>>, vector<1x1x16x13xf32>,
    return
  }
  func.func @transform_0(%arg0: i32, %arg1: i32) -> (i32, i32, i32, i32) {
    %c4_i32 = arith.constant 4 : i32
    %0 = arith.muli %c4_i32, %arg1 : i32
    %c0_i32 = arith.constant 0 : i32
    %c0_i32_0 = arith.constant 0 : i32
    %c0_i32_1 = arith.constant 0 : i32
    return %arg0, %c0_i32, %0, %c0_i32_0 : i32, i32, i32, i32
  }
  func.func @transform_1(%arg0: i32, %arg1: i32) -> (i32, i32, i32) {
    %c0_i32 = arith.constant 0 : i32
    %c0_i32_0 = arith.constant 0 : i32
    %c0_i32_1 = arith.constant 0 : i32
    %c0_i32_2 = arith.constant 0 : i32
    return %c0_i32, %c0_i32_0, %c0_i32_1 : i32, i32, i32
  }
  func.func @transform_2(%arg0: i32, %arg1: i32) -> (i32, i32) {
    %c0_i32 = arith.constant 0 : i32
    %c0_i32_0 = arith.constant 0 : i32
    %c0_i32_1 = arith.constant 0 : i32
    return %c0_i32, %c0_i32_0 : i32, i32
  }
  func.func @transform_3(%arg0: i32, %arg1: i32) -> (i32, i32, i32) {
    %c0_i32 = arith.constant 0 : i32
    %c0_i32_0 = arith.constant 0 : i32
    %c0_i32_1 = arith.constant 0 : i32
    %c0_i32_2 = arith.constant 0 : i32
    return %c0_i32, %c0_i32_0, %c0_i32_1 : i32, i32, i32
  }
  func.func @transform_4(%arg0: i32, %arg1: i32) -> (i32, i32) {
    %c0_i32 = arith.constant 0 : i32
    %c0_i32_0 = arith.constant 0 : i32
    %c0_i32_1 = arith.constant 0 : i32
    return %c0_i32, %c0_i32_0 : i32, i32
  }
  func.func @transform_5(%arg0: i32, %arg1: i32) -> (i32, i32) {
    %c0_i32 = arith.constant 0 : i32
    %c0_i32_0 = arith.constant 0 : i32
    %c0_i32_1 = arith.constant 0 : i32
    return %c0_i32, %c0_i32_0 : i32, i32
  }
  func.func @transform_6(%arg0: i32, %arg1: i32) -> (i32, i32, i32, i32) {
    %c0_i32 = arith.constant 0 : i32
    %c0_i32_0 = arith.constant 0 : i32
    %c0_i32_1 = arith.constant 0 : i32
    return %arg0, %arg1, %c0_i32, %c0_i32_0 : i32, i32, i32, i32
  }
}

</mosaic_0001>

<llo_original>
// kernel: _lambda_.1
$region0: #{_lambda_.1}
  #allocation0 [shape = 'u32[]', space=smem, size = 0x4, offset = 0x4, fixed_abs, tag = 'smem constant byte address 0x4 - core index']
  #allocation1 [shape = 'u32[144,128]{1,0:T(1,128)}', space=vmem, size = 0x12000, scoped, tag = 'internal scratch']
  %s0 = inlined_call_operand.vmem [shape: f32[2,4,1,64], index: 0, kind: input, shape index: {}]
  %s1 = inlined_call_operand.vmem [shape: f32[5,8,4], index: 1, kind: input, shape index: {}]
  %s2 = inlined_call_operand.vmem [shape: f32[8,1], index: 2, kind: input, shape index: {}]
  %s3 = inlined_call_operand.vmem [shape: f32[5,16,8], index: 3, kind: input, shape index: {}]
  %s4 = inlined_call_operand.vmem [shape: f32[16,1], index: 4, kind: input, shape index: {}]
  %s5 = inlined_call_operand.vmem [shape: f32[49,13], index: 5, kind: input, shape index: {}]
  %s6 = inlined_call_operand.vmem [shape: f32[2,1,16,13], index: 6, kind: output, shape index: {}]
  %s7 = sld [smem:[#allocation0]]
  $region57: #{_lambda_.1} parent=0
    _
  %s9 = ssub.s32 1, %s7
  %s10 = scalar_select 0, %s9, %s7
  loop: start=0, step=1, limit=4
  $region2: #{_lambda_.1} parent=0 // loop_pre_header
    _
  $region3: #{_lambda_.1} parent=0 // loop_header
    %s12 = sphi 0, %s16
    %p13 = scmp.ge.s32.totalorder %s12, 4
    %s19 = sphi 0, %s31
    %s20 = sphi 0, %s27
    %s21 = sphi 0, %s19
    %s22 = sphi 0, %s20
    %s23 = sphi 0, %s21
    %s24 = sphi 0, %s22
    %s38 = sphi 0, %s40
    %s41 = sphi 0, %s38
    %s42 = sphi 0, %s41
    %s58 = sphi 0, %s42
    %s62 = sphi 0, %s62
    %s64 = sphi 0, %s62
    %s65 = sphi 0, %s64
    %s79 = sphi 0, %s65
    %s83 = sphi 0, %s83
    %s85 = sphi 0, %s83
    %s86 = sphi 0, %s85
    %s100 = sphi 0, %s86
    %s104 = sphi 0, %s104
    %s106 = sphi 0, %s104
    %s107 = sphi 0, %s106
    %s121 = sphi 0, %s107
    %s125 = sphi 0, %s125
    %s127 = sphi 0, %s125
    %s128 = sphi 0, %s127
    %s142 = sphi 0, %s128
    %s146 = sphi 0, %s146
    %s148 = sphi 0, %s146
    %s149 = sphi 0, %s148
    %s163 = sphi 0, %s149
    %s171 = sphi 0, %s173
    %s174 = sphi 0, %s171
    %s175 = sphi 0, %s174
    %s191 = sphi 0, %s175
  $region4: #{_lambda_.1} parent=0 // loop_header_branch
    %15 = sbr.rel (%p13) target = $region8
  $region5: #{_lambda_.1} parent=0 // loop_body
    %s17 = ssub.s32 %s12, 1
    %s18 = ssub.s32 %s12, 2
    %s25 = sadd.s32 1, %s20
    %p26 = scmp.ge.s32.totalorder %s25, 1
    %s27 = scalar_select %p26, 0, %s25
    %s28 = sadd.s32 1, %s19
    %s29 = scalar_select %p26, %s28, %s19
    %p30 = scmp.ge.s32.totalorder %s29, 2
    %s31 = scalar_select %p30, 0, %s29
    %s32 = smul.u32 %s20, 4
    %s33 = smul.u32 %s27, 4
    %s34 = ssub.s32 %s19, %s31
    %s35 = ssub.s32 %s32, %s33
    %s36 = sor.u32 %s34, %s35
    %p37 = scmp.eq.s32.totalorder %s36, 0
    %s39 = sadd.s32 %s38, 1
    %s40 = scalar_select %p37, %s38, %s39
    %p43 = pneg %p37
    %p44 = scmp.eq.s32.totalorder %s12, 1
    %p45 = por %p43, %p44
    %p46 = scmp.ne.s32.totalorder %s38, %s41
    %p47 = scmp.eq.s32.totalorder %s12, 0
    %p48 = por %p46, %p47
    %p49 = scmp.ne.s32.totalorder %s38, %s41
    %p50 = scmp.eq.s32.totalorder %s17, 1
    %p51 = por %p49, %p50
    %p52 = scmp.ne.s32.totalorder %s41, %s42
    %p53 = scmp.eq.s32.totalorder %s17, 0
    %p54 = por %p52, %p53
    %p55 = scmp.ne.s32.totalorder %s41, %s42
    %p56 = scmp.eq.s32.totalorder %s18, 1
    %p57 = por %p55, %p56
    %p59 = scmp.ne.s32.totalorder %s42, %s58
    %p60 = scmp.eq.s32.totalorder %s18, 0
    %p61 = por %p59, %p60
    %s63 = sadd.s32 %s62, 1
    %p66 = scmp.eq.s32.totalorder %s12, 1
    %p67 = scmp.ne.s32.totalorder %s62, %s64
    %p68 = scmp.eq.s32.totalorder %s12, 0
    %p69 = por %p67, %p68
    %p70 = scmp.ne.s32.totalorder %s62, %s64
    %p71 = scmp.eq.s32.totalorder %s17, 1
    %p72 = por %p70, %p71
    %p73 = scmp.ne.s32.totalorder %s64, %s65
    %p74 = scmp.eq.s32.totalorder %s17, 0
    %p75 = por %p73, %p74
    %p76 = scmp.ne.s32.totalorder %s64, %s65
    %p77 = scmp.eq.s32.totalorder %s18, 1
    %p78 = por %p76, %p77
    %p80 = scmp.ne.s32.totalorder %s65, %s79
    %p81 = scmp.eq.s32.totalorder %s18, 0
    %p82 = por %p80, %p81
    %s84 = sadd.s32 %s83, 1
    %p87 = scmp.eq.s32.totalorder %s12, 1
    %p88 = scmp.ne.s32.totalorder %s83, %s85
    %p89 = scmp.eq.s32.totalorder %s12, 0
    %p90 = por %p88, %p89
    %p91 = scmp.ne.s32.totalorder %s83, %s85
    %p92 = scmp.eq.s32.totalorder %s17, 1
    %p93 = por %p91, %p92
    %p94 = scmp.ne.s32.totalorder %s85, %s86
    %p95 = scmp.eq.s32.totalorder %s17, 0
    %p96 = por %p94, %p95
    %p97 = scmp.ne.s32.totalorder %s85, %s86
    %p98 = scmp.eq.s32.totalorder %s18, 1
    %p99 = por %p97, %p98
    %p101 = scmp.ne.s32.totalorder %s86, %s100
    %p102 = scmp.eq.s32.totalorder %s18, 0
    %p103 = por %p101, %p102
    %s105 = sadd.s32 %s104, 1
    %p108 = scmp.eq.s32.totalorder %s12, 1
    %p109 = scmp.ne.s32.totalorder %s104, %s106
    %p110 = scmp.eq.s32.totalorder %s12, 0
    %p111 = por %p109, %p110
    %p112 = scmp.ne.s32.totalorder %s104, %s106
    %p113 = scmp.eq.s32.totalorder %s17, 1
    %p114 = por %p112, %p113
    %p115 = scmp.ne.s32.totalorder %s106, %s107
    %p116 = scmp.eq.s32.totalorder %s17, 0
    %p117 = por %p115, %p116
    %p118 = scmp.ne.s32.totalorder %s106, %s107
    %p119 = scmp.eq.s32.totalorder %s18, 1
    %p120 = por %p118, %p119
    %p122 = scmp.ne.s32.totalorder %s107, %s121
    %p123 = scmp.eq.s32.totalorder %s18, 0
    %p124 = por %p122, %p123
    %s126 = sadd.s32 %s125, 1
    %p129 = scmp.eq.s32.totalorder %s12, 1
    %p130 = scmp.ne.s32.totalorder %s125, %s127
    %p131 = scmp.eq.s32.totalorder %s12, 0
    %p132 = por %p130, %p131
    %p133 = scmp.ne.s32.totalorder %s125, %s127
    %p134 = scmp.eq.s32.totalorder %s17, 1
    %p135 = por %p133, %p134
    %p136 = scmp.ne.s32.totalorder %s127, %s128
    %p137 = scmp.eq.s32.totalorder %s17, 0
    %p138 = por %p136, %p137
    %p139 = scmp.ne.s32.totalorder %s127, %s128
    %p140 = scmp.eq.s32.totalorder %s18, 1
    %p141 = por %p139, %p140
    %p143 = scmp.ne.s32.totalorder %s128, %s142
    %p144 = scmp.eq.s32.totalorder %s18, 0
    %p145 = por %p143, %p144
    %s147 = sadd.s32 %s146, 1
    %p150 = scmp.eq.s32.totalorder %s12, 1
    %p151 = scmp.ne.s32.totalorder %s146, %s148
    %p152 = scmp.eq.s32.totalorder %s12, 0
    %p153 = por %p151, %p152
    %p154 = scmp.ne.s32.totalorder %s146, %s148
    %p155 = scmp.eq.s32.totalorder %s17, 1
    %p156 = por %p154, %p155
    %p157 = scmp.ne.s32.totalorder %s148, %s149
    %p158 = scmp.eq.s32.totalorder %s17, 0
    %p159 = por %p157, %p158
    %p160 = scmp.ne.s32.totalorder %s148, %s149
    %p161 = scmp.eq.s32.totalorder %s18, 1
    %p162 = por %p160, %p161
    %p164 = scmp.ne.s32.totalorder %s149, %s163
    %p165 = scmp.eq.s32.totalorder %s18, 0
    %p166 = por %p164, %p165
    %s167 = ssub.s32 %s19, %s31
    %s168 = ssub.s32 %s20, %s27
    %s169 = sor.u32 %s167, %s168
    %p170 = scmp.eq.s32.totalorder %s169, 0
    %s172 = sadd.s32 %s171, 1
    %s173 = scalar_select %p170, %s171, %s172
    %p176 = pneg %p170
    %p177 = scmp.eq.s32.totalorder %s12, 1
    %p178 = por %p176, %p177
    %p179 = scmp.ne.s32.totalorder %s171, %s174
    %p180 = scmp.eq.s32.totalorder %s12, 0
    %p181 = por %p179, %p180
    %p182 = scmp.ne.s32.totalorder %s171, %s174
    %p183 = scmp.eq.s32.totalorder %s17, 1
    %p184 = por %p182, %p183
    %p185 = scmp.ne.s32.totalorder %s174, %s175
    %p186 = scmp.eq.s32.totalorder %s17, 0
    %p187 = por %p185, %p186
    %p188 = scmp.ne.s32.totalorder %s174, %s175
    %p189 = scmp.eq.s32.totalorder %s18, 1
    %p190 = por %p188, %p189
    %p192 = scmp.ne.s32.totalorder %s175, %s191
    %p193 = scmp.eq.s32.totalorder %s18, 0
    %p194 = por %p192, %p193
    %p195 = scmp.le.s32.totalorder 1, %s12
    %p196 = scmp.lt.s32.totalorder %s12, 3
    %p197 = pnand %p195, %p196
    %p198 = pneg %p197
    // Predicated region
    $region9: #{_lambda_.1} parent=5 // pred_check
      _
    $region10: #{_lambda_.1} parent=5 // pred_check_branch
      %200 = sbr.rel (%p197) target = $region12
    $region11: #{_lambda_.1} parent=5 // pred_region
      %s201 = ssub.s32 %s12, 1
      // Predicated region
      $region13: #{_lambda_.1} parent=11 // pred_check
        %p202 = pneg %p75
      $region14: #{_lambda_.1} parent=11 // pred_check_branch
        %204 = sbr.rel (%p202) target = $region16
      $region15: #{_lambda_.1} parent=11 // pred_region
        _
      $region16: #{_lambda_.1} parent=11 // pred_fallthru
        _
      // Predicated region
      $region17: #{_lambda_.1} parent=11 // pred_check
        %p205 = pneg %p96
      $region18: #{_lambda_.1} parent=11 // pred_check_branch
        %207 = sbr.rel (%p205) target = $region20
      $region19: #{_lambda_.1} parent=11 // pred_region
        _
      $region20: #{_lambda_.1} parent=11 // pred_fallthru
        _
      // Predicated region
      $region21: #{_lambda_.1} parent=11 // pred_check
        %p208 = pneg %p117
      $region22: #{_lambda_.1} parent=11 // pred_check_branch
        %210 = sbr.rel (%p208) target = $region24
      $region23: #{_lambda_.1} parent=11 // pred_region
        _
      $region24: #{_lambda_.1} parent=11 // pred_fallthru
        _
      // Predicated region
      $region25: #{_lambda_.1} parent=11 // pred_check
        %p211 = pneg %p138
      $region26: #{_lambda_.1} parent=11 // pred_check_branch
        %213 = sbr.rel (%p211) target = $region28
      $region27: #{_lambda_.1} parent=11 // pred_region
        _
      $region28: #{_lambda_.1} parent=11 // pred_fallthru
        _
      // Predicated region
      $region29: #{_lambda_.1} parent=11 // pred_check
        %p214 = pneg %p159
      $region30: #{_lambda_.1} parent=11 // pred_check_branch
        %216 = sbr.rel (%p214) target = $region32
      $region31: #{_lambda_.1} parent=11 // pred_region
        _
      $region32: #{_lambda_.1} parent=11 // pred_fallthru
        _
    $region12: #{_lambda_.1} parent=5 // pred_fallthru
      _
    %p217 = scmp.lt.s32.totalorder %s12, 2
    // Predicated region
    $region33: #{_lambda_.1} parent=5 // pred_check
      %p218 = pneg %p217
    $region34: #{_lambda_.1} parent=5 // pred_check_branch
      %220 = sbr.rel (%p218) target = $region36
    $region35: #{_lambda_.1} parent=5 // pred_region
      // Predicated region
      $region37: #{_lambda_.1} parent=35 // pred_check
        %p221 = pneg %p48
      $region38: #{_lambda_.1} parent=35 // pred_check_branch
        %223 = sbr.rel (%p221) target = $region40
      $region39: #{_lambda_.1} parent=35 // pred_region
        %s224 = smul.u32 %s20, 4
        %p225 = scmp.lt.s32.totalorder %s19, 1
        %s226 = scalar_select %p225, %s19, 1
        %p227 = scmp.lt.s32.totalorder %s224, 0
        %s228 = scalar_select %p227, %s224, 0
        %s229 = smul.addr %s226, 4
        %s230 = sadd.s32 %s228, %s229
        %s231 = scalar_lea.vmem %s0, %s230
        %s232 = smul.u32 %s20, 4
      $region40: #{_lambda_.1} parent=35 // pred_fallthru
        _
    $region36: #{_lambda_.1} parent=5 // pred_fallthru
      _
    %p233 = scmp.le.s32.totalorder 1, %s12
    %p234 = scmp.lt.s32.totalorder %s12, 3
    %p235 = pnand %p233, %p234
    %p236 = pneg %p235
    // Predicated region
    $region41: #{_lambda_.1} parent=5 // pred_check
      _
    $region42: #{_lambda_.1} parent=5 // pred_check_branch
      %238 = sbr.rel (%p235) target = $region44
    $region43: #{_lambda_.1} parent=5 // pred_region
      %s239 = ssub.s32 %s12, 1
      %s240 = smul.u32 %s22, 4
      %p241 = scmp.lt.s32.totalorder %s21, 1
      %s242 = scalar_select %p241, %s21, 1
      %p243 = scmp.lt.s32.totalorder %s240, 0
      %s244 = scalar_select %p243, %s240, 0
      %s245 = smul.addr %s242, 4
      %s246 = sadd.s32 %s244, %s245
      %s247 = scalar_lea.vmem %s0, %s246
      %p248 = pneg %p54
      %p249 = pneg %p51
      %p250 = pneg %p75
      %p251 = pneg %p72
      %p252 = pneg %p96
      %p253 = pneg %p93
      %p254 = pneg %p117
      %p255 = pneg %p114
      %p256 = pneg %p138
      %p257 = pneg %p135
      %p258 = pneg %p159
      %p259 = pneg %p156
      %p260 = pneg %p187
      %p261 = pneg %p184
      %p262 = scmp.lt.s32.totalorder %s21, 1
      %s263 = scalar_select %p262, %s21, 1
      %p264 = scmp.lt.s32.totalorder %s22, 0
      %s265 = scalar_select %p264, %s22, 0
      %s266 = smul.addr %s265, 2
      %s267 = smul.addr %s263, 2
      %s268 = sadd.s32 %s266, %s267
      %s269 = smul.addr %s268, 8
      %s270 = scalar_lea.vmem %s6, %s269
      %s271 = smul.u32 %s22, 4
      %p272 = scmp.lt.s32.totalorder %s21, 1
      %s273 = scalar_select %p272, %s21, 1
      %p274 = scmp.lt.s32.totalorder %s271, 0
      %s275 = scalar_select %p274, %s271, 0
      %s276 = smul.addr %s273, 4
      %s277 = sadd.s32 %s275, %s276
      %s278 = scalar_lea.vmem %s0, %s277
      %s279 = smul.u32 %s22, 4
      %p280 = scmp.lt.s32.totalorder %s21, 1
      %s281 = scalar_select %p280, %s21, 1
      %p282 = scmp.lt.s32.totalorder %s22, 0
      %s283 = scalar_select %p282, %s22, 0
      %s284 = smul.addr %s283, 2
      %s285 = smul.addr %s281, 2
      %s286 = sadd.s32 %s284, %s285
      %s287 = smul.addr %s286, 8
      %s288 = scalar_lea.vmem %s6, %s287
      %v289 = vld [vmem:[%s278] sm:$0x1]
      %v290 = vld [vmem:[%s278 + $0x1] sm:$0x1]
      %v291 = vld [vmem:[%s278 + $0x2] sm:$0x1]
      %v292 = vld [vmem:[%s278 + $0x3] sm:$0x1]
      %v293 = vld [vmem:[%s1] sm:$0xff]
      %s294 = scalar_lea.vmem %s1, 8
      %v295 = vld [vmem:[%s294] sm:$0xff]
      %v300 = vcombine.low %v289, %v290
      %v301 = vcombine.low %v291, %v292
      %v303 = vunpack.c.l.s4 1966171168
      %v304 = vunpack.c.0.s8 %v303
      %v305 = vlaneseq
      %v306 = vshrl.u32 %v305, 7
      %v307 = vsub.s32 %v304, %v306
      %v308 = vrot.slane %v300, %v307
      %v310 = vunpack.c.l.s4 1966171168
      %v311 = vunpack.c.0.s8 %v310
      %v312 = vlaneseq
      %v313 = vshrl.u32 %v312, 7
      %v314 = vsub.s32 %v311, %v313
      %v315 = vrot.slane %v301, %v314
      %v316 = vcombine.low %v308, %v315
      %v318 = vunpack.c.l.s4 1966171168
      %v319 = vunpack.c.0.s8 %v318
      %v320 = vlaneseq
      %v321 = vshrl.u32 %v320, 7
      %v322 = vsub.s32 %v319, %v321
      %v323 = vrot.slane %v316, %v322
      %324 = vrot.lane.b32.xlu0 %v323, 127
      %v325 = vpop.permute.xlu0 %324
      %vm326 = vcmask 31744
      %v328 = vsel %vm326, %v295, 0
      %vm330 = vcmask 1043456
      %v331 = vsel %vm330, %v325, 0
      %333 = vmatprep.subr.mxu0 0.0
      %334 = vmatpush1.msra.mxu0 %v331
      %335 = vmatprep.subr.mxu0 0.0
      %336 = vmatpush1.msra.mxu0 0.0
      %337 = vmatprep.subr.mxu0 0.0
      %338 = vmatpush1.msra.mxu0 0.0
      %339 = vmatprep.subr.mxu0 0.0
      %340 = vmatpush1.msra.mxu0 0.0
      %341 = vmatprep.subr.mxu0 0.0
      %342 = vmatpush1.msra.mxu0 0.0
      %343 = vmatprep.subr.mxu0 0.0
      %344 = vmatpush1.msra.mxu0 0.0
      %345 = vmatprep.subr.mxu0 0.0
      %346 = vmatpush1.msra.mxu0 0.0
      %347 = vmatprep.subr.mxu0 0.0
      %348 = vmatpush1.msra.mxu0 0.0
      %349 = vmatprep.subr.mxu0 0.0
      %350 = vmatpush1.msra.mxu0 0.0
      %351 = vmatprep.subr.mxu0 0.0
      %352 = vmatpush1.msra.mxu0 0.0
      %353 = vmatprep.subr.mxu0 0.0
      %354 = vmatpush1.msra.mxu0 0.0
      %355 = vmatprep.subr.mxu0 0.0
      %356 = vmatpush1.msra.mxu0 0.0
      %357 = vmatprep.subr.mxu0 0.0
      %358 = vmatpush1.msra.mxu0 0.0
      %359 = vmatprep.subr.mxu0 0.0
      %360 = vmatpush1.msra.mxu0 0.0
      %361 = vmatprep.subr.mxu0 0.0
      %362 = vmatpush1.msra.mxu0 0.0
      %363 = vmatprep.subr.mxu0 0.0
      %364 = vmatpush1.msra.mxu0 0.0
      %365 = vmatprep.subr.mxu0 0.0
      %366 = vmatpush1.msra.mxu0 0.0
      %367 = vmatprep.subr.mxu0 0.0
      %368 = vmatpush1.msra.mxu0 0.0
      %369 = vmatprep.subr.mxu0 0.0
      %370 = vmatpush1.msra.mxu0 0.0
      %371 = vmatprep.subr.mxu0 0.0
      %372 = vmatpush1.msra.mxu0 0.0
      %373 = vmatprep.subr.mxu0 0.0
      %374 = vmatpush1.msra.mxu0 0.0
      %375 = vmatprep.subr.mxu0 0.0
      %376 = vmatpush1.msra.mxu0 0.0
      %377 = vmatprep.subr.mxu0 0.0
      %378 = vmatpush1.msra.mxu0 0.0
      %379 = vmatprep.subr.mxu0 0.0
      %380 = vmatpush1.msra.mxu0 0.0
      %381 = vmatprep.subr.mxu0 0.0
      %382 = vmatpush1.msra.mxu0 0.0
      %383 = vmatprep.subr.mxu0 0.0
      %384 = vmatpush1.msra.mxu0 0.0
      %385 = vmatprep.subr.mxu0 0.0
      %386 = vmatpush1.msra.mxu0 0.0
      %387 = vmatprep.subr.mxu0 0.0
      %388 = vmatpush1.msra.mxu0 0.0
      %389 = vmatprep.subr.mxu0 0.0
      %390 = vmatpush1.msra.mxu0 0.0
      %391 = vmatprep.subr.mxu0 0.0
      %392 = vmatpush1.msra.mxu0 0.0
      %393 = vmatprep.subr.mxu0 0.0
      %394 = vmatpush1.msra.mxu0 0.0
      %395 = vmatprep.subr.mxu0 0.0
      %396 = vmatpush1.msra.mxu0 0.0
      %397 = vmatprep.mubr.f32.mxu0 0.0
      %398 = vmatmul.mubr.f32.gmra.mrb[0].mxu0 %v328
      %v399 = vpop.f32.mrb[0].mxu0
      %v400 = vadd.f32 0.0, %v399
      %v401 = vpop.f32.mrb[0].mxu0
      %402 = vdwg.mxu0
      %v404 = vsel %vm326, %v293, 0
      %v406 = vsel %vm330, %v323, 0
      %408 = vmatprep.subr.mxu0 0.0
      %409 = vmatpush1.msra.mxu0 %v406
      %410 = vmatprep.subr.mxu0 0.0
      %411 = vmatpush1.msra.mxu0 0.0
      %412 = vmatprep.subr.mxu0 0.0
      %413 = vmatpush1.msra.mxu0 0.0
      %414 = vmatprep.subr.mxu0 0.0
      %415 = vmatpush1.msra.mxu0 0.0
      %416 = vmatprep.subr.mxu0 0.0
      %417 = vmatpush1.msra.mxu0 0.0
      %418 = vmatprep.subr.mxu0 0.0
      %419 = vmatpush1.msra.mxu0 0.0
      %420 = vmatprep.subr.mxu0 0.0
      %421 = vmatpush1.msra.mxu0 0.0
      %422 = vmatprep.subr.mxu0 0.0
      %423 = vmatpush1.msra.mxu0 0.0
      %424 = vmatprep.subr.mxu0 0.0
      %425 = vmatpush1.msra.mxu0 0.0
      %426 = vmatprep.subr.mxu0 0.0
      %427 = vmatpush1.msra.mxu0 0.0
      %428 = vmatprep.subr.mxu0 0.0
      %429 = vmatpush1.msra.mxu0 0.0
      %430 = vmatprep.subr.mxu0 0.0
      %431 = vmatpush1.msra.mxu0 0.0
      %432 = vmatprep.subr.mxu0 0.0
      %433 = vmatpush1.msra.mxu0 0.0
      %434 = vmatprep.subr.mxu0 0.0
      %435 = vmatpush1.msra.mxu0 0.0
      %436 = vmatprep.subr.mxu0 0.0
      %437 = vmatpush1.msra.mxu0 0.0
      %438 = vmatprep.subr.mxu0 0.0
      %439 = vmatpush1.msra.mxu0 0.0
      %440 = vmatprep.subr.mxu0 0.0
      %441 = vmatpush1.msra.mxu0 0.0
      %442 = vmatprep.subr.mxu0 0.0
      %443 = vmatpush1.msra.mxu0 0.0
      %444 = vmatprep.subr.mxu0 0.0
      %445 = vmatpush1.msra.mxu0 0.0
      %446 = vmatprep.subr.mxu0 0.0
      %447 = vmatpush1.msra.mxu0 0.0
      %448 = vmatprep.subr.mxu0 0.0
      %449 = vmatpush1.msra.mxu0 0.0
      %450 = vmatprep.subr.mxu0 0.0
      %451 = vmatpush1.msra.mxu0 0.0
      %452 = vmatprep.subr.mxu0 0.0
      %453 = vmatpush1.msra.mxu0 0.0
      %454 = vmatprep.subr.mxu0 0.0
      %455 = vmatpush1.msra.mxu0 0.0
      %456 = vmatprep.subr.mxu0 0.0
      %457 = vmatpush1.msra.mxu0 0.0
      %458 = vmatprep.subr.mxu0 0.0
      %459 = vmatpush1.msra.mxu0 0.0
      %460 = vmatprep.subr.mxu0 0.0
      %461 = vmatpush1.msra.mxu0 0.0
      %462 = vmatprep.subr.mxu0 0.0
      %463 = vmatpush1.msra.mxu0 0.0
      %464 = vmatprep.subr.mxu0 0.0
      %465 = vmatpush1.msra.mxu0 0.0
      %466 = vmatprep.subr.mxu0 0.0
      %467 = vmatpush1.msra.mxu0 0.0
      %468 = vmatprep.subr.mxu0 0.0
      %469 = vmatpush1.msra.mxu0 0.0
      %470 = vmatprep.subr.mxu0 0.0
      %471 = vmatpush1.msra.mxu0 0.0
      %472 = vmatprep.mubr.f32.mxu0 0.0
      %473 = vmatmul.mubr.f32.gmra.mrb[0].mxu0 %v404
      %v474 = vpop.f32.mrb[0].mxu0
      %v475 = vadd.f32 %v400, %v474
      %v476 = vpop.f32.mrb[0].mxu0
      %477 = vdwg.mxu0
      %s478 = scalar_lea.vmem %s1, 16
      %v479 = vld [vmem:[%s478] sm:$0xff]
      %480 = vrot.lane.b32.xlu0 %v323, 126
      %v481 = vpop.permute.xlu0 %480
      %v483 = vsel %vm326, %v479, 0
      %v485 = vsel %vm330, %v481, 0
      %487 = vmatprep.subr.mxu0 0.0
      %488 = vmatpush1.msra.mxu0 %v485
      %489 = vmatprep.subr.mxu0 0.0
      %490 = vmatpush1.msra.mxu0 0.0
      %491 = vmatprep.subr.mxu0 0.0
      %492 = vmatpush1.msra.mxu0 0.0
      %493 = vmatprep.subr.mxu0 0.0
      %494 = vmatpush1.msra.mxu0 0.0
      %495 = vmatprep.subr.mxu0 0.0
      %496 = vmatpush1.msra.mxu0 0.0
      %497 = vmatprep.subr.mxu0 0.0
      %498 = vmatpush1.msra.mxu0 0.0
      %499 = vmatprep.subr.mxu0 0.0
      %500 = vmatpush1.msra.mxu0 0.0
      %501 = vmatprep.subr.mxu0 0.0
      %502 = vmatpush1.msra.mxu0 0.0
      %503 = vmatprep.subr.mxu0 0.0
      %504 = vmatpush1.msra.mxu0 0.0
      %505 = vmatprep.subr.mxu0 0.0
      %506 = vmatpush1.msra.mxu0 0.0
      %507 = vmatprep.subr.mxu0 0.0
      %508 = vmatpush1.msra.mxu0 0.0
      %509 = vmatprep.subr.mxu0 0.0
      %510 = vmatpush1.msra.mxu0 0.0
      %511 = vmatprep.subr.mxu0 0.0
      %512 = vmatpush1.msra.mxu0 0.0
      %513 = vmatprep.subr.mxu0 0.0
      %514 = vmatpush1.msra.mxu0 0.0
      %515 = vmatprep.subr.mxu0 0.0
      %516 = vmatpush1.msra.mxu0 0.0
      %517 = vmatprep.subr.mxu0 0.0
      %518 = vmatpush1.msra.mxu0 0.0
      %519 = vmatprep.subr.mxu0 0.0
      %520 = vmatpush1.msra.mxu0 0.0
      %521 = vmatprep.subr.mxu0 0.0
      %522 = vmatpush1.msra.mxu0 0.0
      %523 = vmatprep.subr.mxu0 0.0
      %524 = vmatpush1.msra.mxu0 0.0
      %525 = vmatprep.subr.mxu0 0.0
      %526 = vmatpush1.msra.mxu0 0.0
      %527 = vmatprep.subr.mxu0 0.0
      %528 = vmatpush1.msra.mxu0 0.0
      %529 = vmatprep.subr.mxu0 0.0
      %530 = vmatpush1.msra.mxu0 0.0
      %531 = vmatprep.subr.mxu0 0.0
      %532 = vmatpush1.msra.mxu0 0.0
      %533 = vmatprep.subr.mxu0 0.0
      %534 = vmatpush1.msra.mxu0 0.0
      %535 = vmatprep.subr.mxu0 0.0
      %536 = vmatpush1.msra.mxu0 0.0
      %537 = vmatprep.subr.mxu0 0.0
      %538 = vmatpush1.msra.mxu0 0.0
      %539 = vmatprep.subr.mxu0 0.0
      %540 = vmatpush1.msra.mxu0 0.0
      %541 = vmatprep.subr.mxu0 0.0
      %542 = vmatpush1.msra.mxu0 0.0
      %543 = vmatprep.subr.mxu0 0.0
      %544 = vmatpush1.msra.mxu0 0.0
      %545 = vmatprep.subr.mxu0 0.0
      %546 = vmatpush1.msra.mxu0 0.0
      %547 = vmatprep.subr.mxu0 0.0
      %548 = vmatpush1.msra.mxu0 0.0
      %549 = vmatprep.subr.mxu0 0.0
      %550 = vmatpush1.msra.mxu0 0.0
      %551 = vmatprep.mubr.f32.mxu0 0.0
      %552 = vmatmul.mubr.f32.gmra.mrb[0].mxu0 %v483
      %v553 = vpop.f32.mrb[0].mxu0
      %v554 = vadd.f32 0.0, %v553
      %v555 = vpop.f32.mrb[0].mxu0
      %556 = vdwg.mxu0
      %v557 = vadd.f32 %v475, %v554
      %s558 = scalar_lea.vmem %s1, 24
      %v559 = vld [vmem:[%s558] sm:$0xff]
      %560 = vrot.lane.b32.xlu0 %v323, 125
      %v561 = vpop.permute.xlu0 %560
      %v563 = vsel %vm326, %v559, 0
      %v565 = vsel %vm330, %v561, 0
      %567 = vmatprep.subr.mxu0 0.0
      %568 = vmatpush1.msra.mxu0 %v565
      %569 = vmatprep.subr.mxu0 0.0
      %570 = vmatpush1.msra.mxu0 0.0
      %571 = vmatprep.subr.mxu0 0.0
      %572 = vmatpush1.msra.mxu0 0.0
      %573 = vmatprep.subr.mxu0 0.0
      %574 = vmatpush1.msra.mxu0 0.0
      %575 = vmatprep.subr.mxu0 0.0
      %576 = vmatpush1.msra.mxu0 0.0
      %577 = vmatprep.subr.mxu0 0.0
      %578 = vmatpush1.msra.mxu0 0.0
      %579 = vmatprep.subr.mxu0 0.0
      %580 = vmatpush1.msra.mxu0 0.0
      %581 = vmatprep.subr.mxu0 0.0
      %582 = vmatpush1.msra.mxu0 0.0
      %583 = vmatprep.subr.mxu0 0.0
      %584 = vmatpush1.msra.mxu0 0.0
      %585 = vmatprep.subr.mxu0 0.0
      %586 = vmatpush1.msra.mxu0 0.0
      %587 = vmatprep.subr.mxu0 0.0
      %588 = vmatpush1.msra.mxu0 0.0
      %589 = vmatprep.subr.mxu0 0.0
      %590 = vmatpush1.msra.mxu0 0.0
      %591 = vmatprep.subr.mxu0 0.0
      %592 = vmatpush1.msra.mxu0 0.0
      %593 = vmatprep.subr.mxu0 0.0
      %594 = vmatpush1.msra.mxu0 0.0
      %595 = vmatprep.subr.mxu0 0.0
      %596 = vmatpush1.msra.mxu0 0.0
      %597 = vmatprep.subr.mxu0 0.0
      %598 = vmatpush1.msra.mxu0 0.0
      %599 = vmatprep.subr.mxu0 0.0
      %600 = vmatpush1.msra.mxu0 0.0
      %601 = vmatprep.subr.mxu0 0.0
      %602 = vmatpush1.msra.mxu0 0.0
      %603 = vmatprep.subr.mxu0 0.0
      %604 = vmatpush1.msra.mxu0 0.0
      %605 = vmatprep.subr.mxu0 0.0
      %606 = vmatpush1.msra.mxu0 0.0
      %607 = vmatprep.subr.mxu0 0.0
      %608 = vmatpush1.msra.mxu0 0.0
      %609 = vmatprep.subr.mxu0 0.0
      %610 = vmatpush1.msra.mxu0 0.0
      %611 = vmatprep.subr.mxu0 0.0
      %612 = vmatpush1.msra.mxu0 0.0
      %613 = vmatprep.subr.mxu0 0.0
      %614 = vmatpush1.msra.mxu0 0.0
      %615 = vmatprep.subr.mxu0 0.0
      %616 = vmatpush1.msra.mxu0 0.0
      %617 = vmatprep.subr.mxu0 0.0
      %618 = vmatpush1.msra.mxu0 0.0
      %619 = vmatprep.subr.mxu0 0.0
      %620 = vmatpush1.msra.mxu0 0.0
      %621 = vmatprep.subr.mxu0 0.0
      %622 = vmatpush1.msra.mxu0 0.0
      %623 = vmatprep.subr.mxu0 0.0
      %624 = vmatpush1.msra.mxu0 0.0
      %625 = vmatprep.subr.mxu0 0.0
      %626 = vmatpush1.msra.mxu0 0.0
      %627 = vmatprep.subr.mxu0 0.0
      %628 = vmatpush1.msra.mxu0 0.0
      %629 = vmatprep.subr.mxu0 0.0
      %630 = vmatpush1.msra.mxu0 0.0
      %631 = vmatprep.mubr.f32.mxu0 0.0
      %632 = vmatmul.mubr.f32.gmra.mrb[0].mxu0 %v563
      %v633 = vpop.f32.mrb[0].mxu0
      %v634 = vadd.f32 0.0, %v633
      %v635 = vpop.f32.mrb[0].mxu0
      %636 = vdwg.mxu0
      %v637 = vadd.f32 %v557, %v634
      %s638 = scalar_lea.vmem %s1, 32
      %v639 = vld [vmem:[%s638] sm:$0xff]
      %640 = vrot.lane.b32.xlu0 %v323, 124
      %v641 = vpop.permute.xlu0 %640
      %v643 = vsel %vm326, %v639, 0
      %v645 = vsel %vm330, %v641, 0
      %647 = vmatprep.subr.mxu0 0.0
      %648 = vmatpush1.msra.mxu0 %v645
      %649 = vmatprep.subr.mxu0 0.0
      %650 = vmatpush1.msra.mxu0 0.0
      %651 = vmatprep.subr.mxu0 0.0
      %652 = vmatpush1.msra.mxu0 0.0
      %653 = vmatprep.subr.mxu0 0.0
      %654 = vmatpush1.msra.mxu0 0.0
      %655 = vmatprep.subr.mxu0 0.0
      %656 = vmatpush1.msra.mxu0 0.0
      %657 = vmatprep.subr.mxu0 0.0
      %658 = vmatpush1.msra.mxu0 0.0
      %659 = vmatprep.subr.mxu0 0.0
      %660 = vmatpush1.msra.mxu0 0.0
      %661 = vmatprep.subr.mxu0 0.0
      %662 = vmatpush1.msra.mxu0 0.0
      %663 = vmatprep.subr.mxu0 0.0
      %664 = vmatpush1.msra.mxu0 0.0
      %665 = vmatprep.subr.mxu0 0.0
      %666 = vmatpush1.msra.mxu0 0.0
      %667 = vmatprep.subr.mxu0 0.0
      %668 = vmatpush1.msra.mxu0 0.0
      %669 = vmatprep.subr.mxu0 0.0
      %670 = vmatpush1.msra.mxu0 0.0
      %671 = vmatprep.subr.mxu0 0.0
      %672 = vmatpush1.msra.mxu0 0.0
      %673 = vmatprep.subr.mxu0 0.0
      %674 = vmatpush1.msra.mxu0 0.0
      %675 = vmatprep.subr.mxu0 0.0
      %676 = vmatpush1.msra.mxu0 0.0
      %677 = vmatprep.subr.mxu0 0.0
      %678 = vmatpush1.msra.mxu0 0.0
      %679 = vmatprep.subr.mxu0 0.0
      %680 = vmatpush1.msra.mxu0 0.0
      %681 = vmatprep.subr.mxu0 0.0
      %682 = vmatpush1.msra.mxu0 0.0
      %683 = vmatprep.subr.mxu0 0.0
      %684 = vmatpush1.msra.mxu0 0.0
      %685 = vmatprep.subr.mxu0 0.0
      %686 = vmatpush1.msra.mxu0 0.0
      %687 = vmatprep.subr.mxu0 0.0
      %688 = vmatpush1.msra.mxu0 0.0
      %689 = vmatprep.subr.mxu0 0.0
      %690 = vmatpush1.msra.mxu0 0.0
      %691 = vmatprep.subr.mxu0 0.0
      %692 = vmatpush1.msra.mxu0 0.0
      %693 = vmatprep.subr.mxu0 0.0
      %694 = vmatpush1.msra.mxu0 0.0
      %695 = vmatprep.subr.mxu0 0.0
      %696 = vmatpush1.msra.mxu0 0.0
      %697 = vmatprep.subr.mxu0 0.0
      %698 = vmatpush1.msra.mxu0 0.0
      %699 = vmatprep.subr.mxu0 0.0
      %700 = vmatpush1.msra.mxu0 0.0
      %701 = vmatprep.subr.mxu0 0.0
      %702 = vmatpush1.msra.mxu0 0.0
      %703 = vmatprep.subr.mxu0 0.0
      %704 = vmatpush1.msra.mxu0 0.0
      %705 = vmatprep.subr.mxu0 0.0
      %706 = vmatpush1.msra.mxu0 0.0
      %707 = vmatprep.subr.mxu0 0.0
      %708 = vmatpush1.msra.mxu0 0.0
      %709 = vmatprep.subr.mxu0 0.0
      %710 = vmatpush1.msra.mxu0 0.0
      %711 = vmatprep.mubr.f32.mxu0 0.0
      %712 = vmatmul.mubr.f32.gmra.mrb[0].mxu0 %v643
      %v713 = vpop.f32.mrb[0].mxu0
      %v714 = vadd.f32 0.0, %v713
      %v715 = vpop.f32.mrb[0].mxu0
      %716 = vdwg.mxu0
      %v717 = vadd.f32 %v637, %v714
      %v718 = vld [vmem:[%s2] sm:$0xff]
      %720 = vset.pattern.permute.xlu0 0
      %721 = vperm.xlu0 %720, %v718
      %v722 = vpop.permute.xlu0 %721
      %v724 = vadd.f32 %v717, %v722
      %v725 = vmax.f32 %v724, 0.0
      %727 = vrot.lane.b32.xlu0 %v725, 127
      %v728 = vpop.permute.xlu0 %727
      %v730 = vmax.f32 %v725, %v728
      %v731 = vld [vmem:[%s3] sm:$0xff]
      %v732 = vld [vmem:[%s3 + $0x8] sm:$0xff]
      %s733 = scalar_lea.vmem %s3, 16
      %v734 = vld [vmem:[%s733] sm:$0xff]
      %v735 = vld [vmem:[%s733 + $0x8] sm:$0xff]
      %737 = vrot.lane.b32.xlu0 %v730, 126
      %v738 = vpop.permute.xlu0 %737
      %vm740 = vcmask 64512
      %v742 = vsel %vm740, %v734, 0
      %v745 = vsel %vm740, %v735, 0
      %747 = vmatprep.subr.mxu0 0.0
      %748 = vmatpush1.msra.mxu0 %v738
      %749 = vmatprep.subr.mxu0 0.0
      %750 = vmatpush1.msra.mxu0 0.0
      %751 = vmatprep.subr.mxu0 0.0
      %752 = vmatpush1.msra.mxu0 0.0
      %753 = vmatprep.subr.mxu0 0.0
      %754 = vmatpush1.msra.mxu0 0.0
      %755 = vmatprep.subr.mxu0 0.0
      %756 = vmatpush1.msra.mxu0 0.0
      %757 = vmatprep.subr.mxu0 0.0
      %758 = vmatpush1.msra.mxu0 0.0
      %759 = vmatprep.subr.mxu0 0.0
      %760 = vmatpush1.msra.mxu0 0.0
      %761 = vmatprep.subr.mxu0 0.0
      %762 = vmatpush1.msra.mxu0 0.0
      %763 = vmatprep.subr.mxu0 0.0
      %764 = vmatpush1.msra.mxu0 0.0
      %765 = vmatprep.subr.mxu0 0.0
      %766 = vmatpush1.msra.mxu0 0.0
      %767 = vmatprep.subr.mxu0 0.0
      %768 = vmatpush1.msra.mxu0 0.0
      %769 = vmatprep.subr.mxu0 0.0
      %770 = vmatpush1.msra.mxu0 0.0
      %771 = vmatprep.subr.mxu0 0.0
      %772 = vmatpush1.msra.mxu0 0.0
      %773 = vmatprep.subr.mxu0 0.0
      %774 = vmatpush1.msra.mxu0 0.0
      %775 = vmatprep.subr.mxu0 0.0
      %776 = vmatpush1.msra.mxu0 0.0
      %777 = vmatprep.subr.mxu0 0.0
      %778 = vmatpush1.msra.mxu0 0.0
      %779 = vmatprep.subr.mxu0 0.0
      %780 = vmatpush1.msra.mxu0 0.0
      %781 = vmatprep.subr.mxu0 0.0
      %782 = vmatpush1.msra.mxu0 0.0
      %783 = vmatprep.subr.mxu0 0.0
      %784 = vmatpush1.msra.mxu0 0.0
      %785 = vmatprep.subr.mxu0 0.0
      %786 = vmatpush1.msra.mxu0 0.0
      %787 = vmatprep.subr.mxu0 0.0
      %788 = vmatpush1.msra.mxu0 0.0
      %789 = vmatprep.subr.mxu0 0.0
      %790 = vmatpush1.msra.mxu0 0.0
      %791 = vmatprep.subr.mxu0 0.0
      %792 = vmatpush1.msra.mxu0 0.0
      %793 = vmatprep.subr.mxu0 0.0
      %794 = vmatpush1.msra.mxu0 0.0
      %795 = vmatprep.subr.mxu0 0.0
      %796 = vmatpush1.msra.mxu0 0.0
      %797 = vmatprep.subr.mxu0 0.0
      %798 = vmatpush1.msra.mxu0 0.0
      %799 = vmatprep.subr.mxu0 0.0
      %800 = vmatpush1.msra.mxu0 0.0
      %801 = vmatprep.subr.mxu0 0.0
      %802 = vmatpush1.msra.mxu0 0.0
      %803 = vmatprep.subr.mxu0 0.0
      %804 = vmatpush1.msra.mxu0 0.0
      %805 = vmatprep.subr.mxu0 0.0
      %806 = vmatpush1.msra.mxu0 0.0
      %807 = vmatprep.subr.mxu0 0.0
      %808 = vmatpush1.msra.mxu0 0.0
      %809 = vmatprep.subr.mxu0 0.0
      %810 = vmatpush1.msra.mxu0 0.0
      %811 = vmatprep.mubr.f32.mxu0 0.0
      %812 = vmatmul.mubr.f32.gmra.mrb[0].mxu0 %v742
      %v813 = vpop.f32.mrb[0].mxu0
      %v814 = vadd.f32 0.0, %v813
      %v815 = vpop.f32.mrb[0].mxu0
      %816 = vmatprep.mubr.f32.mxu0 0.0
      %817 = vmatmul.mubr.f32.gmra.mrb[0].mxu0 %v745
      %v818 = vpop.f32.mrb[0].mxu0
      %v819 = vadd.f32 0.0, %v818
      %v820 = vpop.f32.mrb[0].mxu0
      %821 = vdwg.mxu0
      %v823 = vsel %vm740, %v731, 0
      %v826 = vsel %vm740, %v732, 0
      %828 = vmatprep.subr.mxu0 0.0
      %829 = vmatpush1.msra.mxu0 %v730
      %830 = vmatprep.subr.mxu0 0.0
      %831 = vmatpush1.msra.mxu0 0.0
      %832 = vmatprep.subr.mxu0 0.0
      %833 = vmatpush1.msra.mxu0 0.0
      %834 = vmatprep.subr.mxu0 0.0
      %835 = vmatpush1.msra.mxu0 0.0
      %836 = vmatprep.subr.mxu0 0.0
      %837 = vmatpush1.msra.mxu0 0.0
      %838 = vmatprep.subr.mxu0 0.0
      %839 = vmatpush1.msra.mxu0 0.0
      %840 = vmatprep.subr.mxu0 0.0
      %841 = vmatpush1.msra.mxu0 0.0
      %842 = vmatprep.subr.mxu0 0.0
      %843 = vmatpush1.msra.mxu0 0.0
      %844 = vmatprep.subr.mxu0 0.0
      %845 = vmatpush1.msra.mxu0 0.0
      %846 = vmatprep.subr.mxu0 0.0
      %847 = vmatpush1.msra.mxu0 0.0
      %848 = vmatprep.subr.mxu0 0.0
      %849 = vmatpush1.msra.mxu0 0.0
      %850 = vmatprep.subr.mxu0 0.0
      %851 = vmatpush1.msra.mxu0 0.0
      %852 = vmatprep.subr.mxu0 0.0
      %853 = vmatpush1.msra.mxu0 0.0
      %854 = vmatprep.subr.mxu0 0.0
      %855 = vmatpush1.msra.mxu0 0.0
      %856 = vmatprep.subr.mxu0 0.0
      %857 = vmatpush1.msra.mxu0 0.0
      %858 = vmatprep.subr.mxu0 0.0
      %859 = vmatpush1.msra.mxu0 0.0
      %860 = vmatprep.subr.mxu0 0.0
      %861 = vmatpush1.msra.mxu0 0.0
      %862 = vmatprep.subr.mxu0 0.0
      %863 = vmatpush1.msra.mxu0 0.0
      %864 = vmatprep.subr.mxu0 0.0
      %865 = vmatpush1.msra.mxu0 0.0
      %866 = vmatprep.subr.mxu0 0.0
      %867 = vmatpush1.msra.mxu0 0.0
      %868 = vmatprep.subr.mxu0 0.0
      %869 = vmatpush1.msra.mxu0 0.0
      %870 = vmatprep.subr.mxu0 0.0
      %871 = vmatpush1.msra.mxu0 0.0
      %872 = vmatprep.subr.mxu0 0.0
      %873 = vmatpush1.msra.mxu0 0.0
      %874 = vmatprep.subr.mxu0 0.0
      %875 = vmatpush1.msra.mxu0 0.0
      %876 = vmatprep.subr.mxu0 0.0
      %877 = vmatpush1.msra.mxu0 0.0
      %878 = vmatprep.subr.mxu0 0.0
      %879 = vmatpush1.msra.mxu0 0.0
      %880 = vmatprep.subr.mxu0 0.0
      %881 = vmatpush1.msra.mxu0 0.0
      %882 = vmatprep.subr.mxu0 0.0
      %883 = vmatpush1.msra.mxu0 0.0
      %884 = vmatprep.subr.mxu0 0.0
      %885 = vmatpush1.msra.mxu0 0.0
      %886 = vmatprep.subr.mxu0 0.0
      %887 = vmatpush1.msra.mxu0 0.0
      %888 = vmatprep.subr.mxu0 0.0
      %889 = vmatpush1.msra.mxu0 0.0
      %890 = vmatprep.subr.mxu0 0.0
      %891 = vmatpush1.msra.mxu0 0.0
      %892 = vmatprep.mubr.f32.mxu0 0.0
      %893 = vmatmul.mubr.f32.gmra.mrb[0].mxu0 %v823
      %v894 = vpop.f32.mrb[0].mxu0
      %v895 = vadd.f32 %v814, %v894
      %v896 = vpop.f32.mrb[0].mxu0
      %897 = vmatprep.mubr.f32.mxu0 0.0
      %898 = vmatmul.mubr.f32.gmra.mrb[0].mxu0 %v826
      %v899 = vpop.f32.mrb[0].mxu0
      %v900 = vadd.f32 %v819, %v899
      %v901 = vpop.f32.mrb[0].mxu0
      %902 = vdwg.mxu0
      %s903 = scalar_lea.vmem %s3, 32
      %v904 = vld [vmem:[%s903] sm:$0xff]
      %v905 = vld [vmem:[%s903 + $0x8] sm:$0xff]
      %906 = vrot.lane.b32.xlu0 %v730, 124
      %v907 = vpop.permute.xlu0 %906
      %v910 = vsel %vm740, %v904, 0
      %v913 = vsel %vm740, %v905, 0
      %915 = vmatprep.subr.mxu0 0.0
      %916 = vmatpush1.msra.mxu0 %v907
      %917 = vmatprep.subr.mxu0 0.0
      %918 = vmatpush1.msra.mxu0 0.0
      %919 = vmatprep.subr.mxu0 0.0
      %920 = vmatpush1.msra.mxu0 0.0
      %921 = vmatprep.subr.mxu0 0.0
      %922 = vmatpush1.msra.mxu0 0.0
      %923 = vmatprep.subr.mxu0 0.0
      %924 = vmatpush1.msra.mxu0 0.0
      %925 = vmatprep.subr.mxu0 0.0
      %926 = vmatpush1.msra.mxu0 0.0
      %927 = vmatprep.subr.mxu0 0.0
      %928 = vmatpush1.msra.mxu0 0.0
      %929 = vmatprep.subr.mxu0 0.0
      %930 = vmatpush1.msra.mxu0 0.0
      %931 = vmatprep.subr.mxu0 0.0
      %932 = vmatpush1.msra.mxu0 0.0
      %933 = vmatprep.subr.mxu0 0.0
      %934 = vmatpush1.msra.mxu0 0.0
      %935 = vmatprep.subr.mxu0 0.0
      %936 = vmatpush1.msra.mxu0 0.0
      %937 = vmatprep.subr.mxu0 0.0
      %938 = vmatpush1.msra.mxu0 0.0
      %939 = vmatprep.subr.mxu0 0.0
      %940 = vmatpush1.msra.mxu0 0.0
      %941 = vmatprep.subr.mxu0 0.0
      %942 = vmatpush1.msra.mxu0 0.0
      %943 = vmatprep.subr.mxu0 0.0
      %944 = vmatpush1.msra.mxu0 0.0
      %945 = vmatprep.subr.mxu0 0.0
      %946 = vmatpush1.msra.mxu0 0.0
      %947 = vmatprep.subr.mxu0 0.0
      %948 = vmatpush1.msra.mxu0 0.0
      %949 = vmatprep.subr.mxu0 0.0
      %950 = vmatpush1.msra.mxu0 0.0
      %951 = vmatprep.subr.mxu0 0.0
      %952 = vmatpush1.msra.mxu0 0.0
      %953 = vmatprep.subr.mxu0 0.0
      %954 = vmatpush1.msra.mxu0 0.0
      %955 = vmatprep.subr.mxu0 0.0
      %956 = vmatpush1.msra.mxu0 0.0
      %957 = vmatprep.subr.mxu0 0.0
      %958 = vmatpush1.msra.mxu0 0.0
      %959 = vmatprep.subr.mxu0 0.0
      %960 = vmatpush1.msra.mxu0 0.0
      %961 = vmatprep.subr.mxu0 0.0
      %962 = vmatpush1.msra.mxu0 0.0
      %963 = vmatprep.subr.mxu0 0.0
      %964 = vmatpush1.msra.mxu0 0.0
      %965 = vmatprep.subr.mxu0 0.0
      %966 = vmatpush1.msra.mxu0 0.0
      %967 = vmatprep.subr.mxu0 0.0
      %968 = vmatpush1.msra.mxu0 0.0
      %969 = vmatprep.subr.mxu0 0.0
      %970 = vmatpush1.msra.mxu0 0.0
      %971 = vmatprep.subr.mxu0 0.0
      %972 = vmatpush1.msra.mxu0 0.0
      %973 = vmatprep.subr.mxu0 0.0
      %974 = vmatpush1.msra.mxu0 0.0
      %975 = vmatprep.subr.mxu0 0.0
      %976 = vmatpush1.msra.mxu0 0.0
      %977 = vmatprep.subr.mxu0 0.0
      %978 = vmatpush1.msra.mxu0 0.0
      %979 = vmatprep.mubr.f32.mxu0 0.0
      %980 = vmatmul.mubr.f32.gmra.mrb[0].mxu0 %v910
      %v981 = vpop.f32.mrb[0].mxu0
      %v982 = vadd.f32 0.0, %v981
      %v983 = vpop.f32.mrb[0].mxu0
      %984 = vmatprep.mubr.f32.mxu0 0.0
      %985 = vmatmul.mubr.f32.gmra.mrb[0].mxu0 %v913
      %v986 = vpop.f32.mrb[0].mxu0
      %v987 = vadd.f32 0.0, %v986
      %v988 = vpop.f32.mrb[0].mxu0
      %989 = vdwg.mxu0
      %v990 = vadd.f32 %v895, %v982
      %v991 = vadd.f32 %v900, %v987
      %s992 = scalar_lea.vmem %s3, 48
      %v993 = vld [vmem:[%s992] sm:$0xff]
      %v994 = vld [vmem:[%s992 + $0x8] sm:$0xff]
      %995 = vrot.lane.b32.xlu0 %v730, 122
      %v996 = vpop.permute.xlu0 %995
      %v999 = vsel %vm740, %v993, 0
      %v1002 = vsel %vm740, %v994, 0
      %1004 = vmatprep.subr.mxu0 0.0
      %1005 = vmatpush1.msra.mxu0 %v996
      %1006 = vmatprep.subr.mxu0 0.0
      %1007 = vmatpush1.msra.mxu0 0.0
      %1008 = vmatprep.subr.mxu0 0.0
      %1009 = vmatpush1.msra.mxu0 0.0
      %1010 = vmatprep.subr.mxu0 0.0
      %1011 = vmatpush1.msra.mxu0 0.0
      %1012 = vmatprep.subr.mxu0 0.0
      %1013 = vmatpush1.msra.mxu0 0.0
      %1014 = vmatprep.subr.mxu0 0.0
      %1015 = vmatpush1.msra.mxu0 0.0
      %1016 = vmatprep.subr.mxu0 0.0
      %1017 = vmatpush1.msra.mxu0 0.0
      %1018 = vmatprep.subr.mxu0 0.0
      %1019 = vmatpush1.msra.mxu0 0.0
      %1020 = vmatprep.subr.mxu0 0.0
      %1021 = vmatpush1.msra.mxu0 0.0
      %1022 = vmatprep.subr.mxu0 0.0
      %1023 = vmatpush1.msra.mxu0 0.0
      %1024 = vmatprep.subr.mxu0 0.0
      %1025 = vmatpush1.msra.mxu0 0.0
      %1026 = vmatprep.subr.mxu0 0.0
      %1027 = vmatpush1.msra.mxu0 0.0
      %1028 = vmatprep.subr.mxu0 0.0
      %1029 = vmatpush1.msra.mxu0 0.0
      %1030 = vmatprep.subr.mxu0 0.0
      %1031 = vmatpush1.msra.mxu0 0.0
      %1032 = vmatprep.subr.mxu0 0.0
      %1033 = vmatpush1.msra.mxu0 0.0
      %1034 = vmatprep.subr.mxu0 0.0
      %1035 = vmatpush1.msra.mxu0 0.0
      %1036 = vmatprep.subr.mxu0 0.0
      %1037 = vmatpush1.msra.mxu0 0.0
      %1038 = vmatprep.subr.mxu0 0.0
      %1039 = vmatpush1.msra.mxu0 0.0
      %1040 = vmatprep.subr.mxu0 0.0
      %1041 = vmatpush1.msra.mxu0 0.0
      %1042 = vmatprep.subr.mxu0 0.0
      %1043 = vmatpush1.msra.mxu0 0.0
      %1044 = vmatprep.subr.mxu0 0.0
      %1045 = vmatpush1.msra.mxu0 0.0
      %1046 = vmatprep.subr.mxu0 0.0
      %1047 = vmatpush1.msra.mxu0 0.0
      %1048 = vmatprep.subr.mxu0 0.0
      %1049 = vmatpush1.msra.mxu0 0.0
      %1050 = vmatprep.subr.mxu0 0.0
      %1051 = vmatpush1.msra.mxu0 0.0
      %1052 = vmatprep.subr.mxu0 0.0
      %1053 = vmatpush1.msra.mxu0 0.0
      %1054 = vmatprep.subr.mxu0 0.0
      %1055 = vmatpush1.msra.mxu0 0.0
      %1056 = vmatprep.subr.mxu0 0.0
      %1057 = vmatpush1.msra.mxu0 0.0
      %1058 = vmatprep.subr.mxu0 0.0
      %1059 = vmatpush1.msra.mxu0 0.0
      %1060 = vmatprep.subr.mxu0 0.0
      %1061 = vmatpush1.msra.mxu0 0.0
      %1062 = vmatprep.subr.mxu0 0.0
      %1063 = vmatpush1.msra.mxu0 0.0
      %1064 = vmatprep.subr.mxu0 0.0
      %1065 = vmatpush1.msra.mxu0 0.0
      %1066 = vmatprep.subr.mxu0 0.0
      %1067 = vmatpush1.msra.mxu0 0.0
      %1068 = vmatprep.mubr.f32.mxu0 0.0
      %1069 = vmatmul.mubr.f32.gmra.mrb[0].mxu0 %v999
      %v1070 = vpop.f32.mrb[0].mxu0
      %v1071 = vadd.f32 0.0, %v1070
      %v1072 = vpop.f32.mrb[0].mxu0
      %1073 = vmatprep.mubr.f32.mxu0 0.0
      %1074 = vmatmul.mubr.f32.gmra.mrb[0].mxu0 %v1002
      %v1075 = vpop.f32.mrb[0].mxu0
      %v1076 = vadd.f32 0.0, %v1075
      %v1077 = vpop.f32.mrb[0].mxu0
      %1078 = vdwg.mxu0
      %v1079 = vadd.f32 %v990, %v1071
      %v1080 = vadd.f32 %v991, %v1076
      %s1081 = scalar_lea.vmem %s3, 64
      %v1082 = vld [vmem:[%s1081] sm:$0xff]
      %v1083 = vld [vmem:[%s1081 + $0x8] sm:$0xff]
      %1084 = vrot.lane.b32.xlu0 %v730, 120
      %v1085 = vpop.permute.xlu0 %1084
      %v1088 = vsel %vm740, %v1082, 0
      %v1091 = vsel %vm740, %v1083, 0
      %1093 = vmatprep.subr.mxu0 0.0
      %1094 = vmatpush1.msra.mxu0 %v1085
      %1095 = vmatprep.subr.mxu0 0.0
      %1096 = vmatpush1.msra.mxu0 0.0
      %1097 = vmatprep.subr.mxu0 0.0
      %1098 = vmatpush1.msra.mxu0 0.0
      %1099 = vmatprep.subr.mxu0 0.0
      %1100 = vmatpush1.msra.mxu0 0.0
      %1101 = vmatprep.subr.mxu0 0.0
      %1102 = vmatpush1.msra.mxu0 0.0
      %1103 = vmatprep.subr.mxu0 0.0
      %1104 = vmatpush1.msra.mxu0 0.0
      %1105 = vmatprep.subr.mxu0 0.0
      %1106 = vmatpush1.msra.mxu0 0.0
      %1107 = vmatprep.subr.mxu0 0.0
      %1108 = vmatpush1.msra.mxu0 0.0
      %1109 = vmatprep.subr.mxu0 0.0
      %1110 = vmatpush1.msra.mxu0 0.0
      %1111 = vmatprep.subr.mxu0 0.0
      %1112 = vmatpush1.msra.mxu0 0.0
      %1113 = vmatprep.subr.mxu0 0.0
      %1114 = vmatpush1.msra.mxu0 0.0
      %1115 = vmatprep.subr.mxu0 0.0
      %1116 = vmatpush1.msra.mxu0 0.0
      %1117 = vmatprep.subr.mxu0 0.0
      %1118 = vmatpush1.msra.mxu0 0.0
      %1119 = vmatprep.subr.mxu0 0.0
      %1120 = vmatpush1.msra.mxu0 0.0
      %1121 = vmatprep.subr.mxu0 0.0
      %1122 = vmatpush1.msra.mxu0 0.0
      %1123 = vmatprep.subr.mxu0 0.0
      %1124 = vmatpush1.msra.mxu0 0.0
      %1125 = vmatprep.subr.mxu0 0.0
      %1126 = vmatpush1.msra.mxu0 0.0
      %1127 = vmatprep.subr.mxu0 0.0
      %1128 = vmatpush1.msra.mxu0 0.0
      %1129 = vmatprep.subr.mxu0 0.0
      %1130 = vmatpush1.msra.mxu0 0.0
      %1131 = vmatprep.subr.mxu0 0.0
      %1132 = vmatpush1.msra.mxu0 0.0
      %1133 = vmatprep.subr.mxu0 0.0
      %1134 = vmatpush1.msra.mxu0 0.0
      %1135 = vmatprep.subr.mxu0 0.0
      %1136 = vmatpush1.msra.mxu0 0.0
      %1137 = vmatprep.subr.mxu0 0.0
      %1138 = vmatpush1.msra.mxu0 0.0
      %1139 = vmatprep.subr.mxu0 0.0
      %1140 = vmatpush1.msra.mxu0 0.0
      %1141 = vmatprep.subr.mxu0 0.0
      %1142 = vmatpush1.msra.mxu0 0.0
      %1143 = vmatprep.subr.mxu0 0.0
      %1144 = vmatpush1.msra.mxu0 0.0
      %1145 = vmatprep.subr.mxu0 0.0
      %1146 = vmatpush1.msra.mxu0 0.0
      %1147 = vmatprep.subr.mxu0 0.0
      %1148 = vmatpush1.msra.mxu0 0.0
      %1149 = vmatprep.subr.mxu0 0.0
      %1150 = vmatpush1.msra.mxu0 0.0
      %1151 = vmatprep.subr.mxu0 0.0
      %1152 = vmatpush1.msra.mxu0 0.0
      %1153 = vmatprep.subr.mxu0 0.0
      %1154 = vmatpush1.msra.mxu0 0.0
      %1155 = vmatprep.subr.mxu0 0.0
      %1156 = vmatpush1.msra.mxu0 0.0
      %1157 = vmatprep.mubr.f32.mxu0 0.0
      %1158 = vmatmul.mubr.f32.gmra.mrb[0].mxu0 %v1088
      %v1159 = vpop.f32.mrb[0].mxu0
      %v1160 = vadd.f32 0.0, %v1159
      %v1161 = vpop.f32.mrb[0].mxu0
      %1162 = vmatprep.mubr.f32.mxu0 0.0
      %1163 = vmatmul.mubr.f32.gmra.mrb[0].mxu0 %v1091
      %v1164 = vpop.f32.mrb[0].mxu0
      %v1165 = vadd.f32 0.0, %v1164
      %v1166 = vpop.f32.mrb[0].mxu0
      %1167 = vdwg.mxu0
      %v1168 = vadd.f32 %v1079, %v1160
      %v1169 = vadd.f32 %v1080, %v1165
      %v1170 = vld [vmem:[%s4] sm:$0xff]
      %v1171 = vld [vmem:[%s4 + $0x8] sm:$0xff]
      %1173 = vset.pattern.permute.xlu0 0
      %1174 = vperm.xlu0 %1173, %v1170
      %v1175 = vpop.permute.xlu0 %1174
      %1178 = vset.pattern.permute.xlu0 0
      %1179 = vperm.xlu0 %1178, %v1171
      %v1180 = vpop.permute.xlu0 %1179
      %v1182 = vadd.f32 %v1168, %v1175
      %v1183 = vadd.f32 %v1169, %v1180
      %v1184 = vmax.f32 %v1182, 0.0
      %v1185 = vmax.f32 %v1183, 0.0
      %1188 = vrot.lane.b32.xlu0 %v1184, 126
      %v1189 = vpop.permute.xlu0 %1188
      %1190 = vrot.lane.b32.xlu0 %v1185, 126
      %v1191 = vpop.permute.xlu0 %1190
      %v1194 = vmax.f32 %v1184, %v1189
      %v1195 = vmax.f32 %v1185, %v1191
      %v1196 = vld [vmem:[%s5] sm:$0xff]
      %v1197 = vld [vmem:[%s5 + $0x8] sm:$0xff]
      %v1198 = vld [vmem:[%s5 + $0x10] sm:$0xff]
      %v1199 = vld [vmem:[%s5 + $0x18] sm:$0xff]
      %v1200 = vld [vmem:[%s5 + $0x20] sm:$0xff]
      %v1201 = vld [vmem:[%s5 + $0x28] sm:$0xff]
      %v1202 = vld [vmem:[%s5 + $0x30] sm:$0x1]
      %vm1203 = vcmask 400384
      %v1205 = vsel %vm1203, %v1194, 0
      %v1208 = vsel %vm1203, %v1195, 0
      %vm1210 = vcmask 1040384
      %v1212 = vsel %vm1210, %v1202, 0
      %1214 = vmatprep.subr.mxu0 0.0
      %v1215 = vand.u32 %v1196, 4294901760
      %1216 = vmatpush1.msra.mxu0 %v1215
      %1217 = vmatprep.subr.mxu0 0.0
      %v1218 = vand.u32 %v1197, 4294901760
      %1219 = vmatpush1.msra.mxu0 %v1218
      %1220 = vmatprep.subr.mxu0 0.0
      %v1221 = vand.u32 %v1198, 4294901760
      %1222 = vmatpush1.msra.mxu0 %v1221
      %1223 = vmatprep.subr.mxu0 0.0
      %v1224 = vand.u32 %v1199, 4294901760
      %1225 = vmatpush1.msra.mxu0 %v1224
      %1226 = vmatprep.subr.mxu0 0.0
      %v1227 = vand.u32 %v1200, 4294901760
      %1228 = vmatpush1.msra.mxu0 %v1227
      %1229 = vmatprep.subr.mxu0 0.0
      %v1230 = vand.u32 %v1201, 4294901760
      %1231 = vmatpush1.msra.mxu0 %v1230
      %1232 = vmatprep.subr.mxu0 0.0
      %v1233 = vand.u32 %v1212, 4294901760
      %1234 = vmatpush1.msra.mxu0 %v1233
      %1235 = vmatprep.subr.mxu0 0.0
      %1236 = vmatpush1.msra.mxu0 0.0
      %1237 = vmatprep.subr.mxu0 0.0
      %1238 = vmatpush1.msra.mxu0 0.0
      %1239 = vmatprep.subr.mxu0 0.0
      %1240 = vmatpush1.msra.mxu0 0.0
      %1241 = vmatprep.subr.mxu0 0.0
      %1242 = vmatpush1.msra.mxu0 0.0
      %1243 = vmatprep.subr.mxu0 0.0
      %1244 = vmatpush1.msra.mxu0 0.0
      %1245 = vmatprep.subr.mxu0 0.0
      %1246 = vmatpush1.msra.mxu0 0.0
      %1247 = vmatprep.subr.mxu0 0.0
      %1248 = vmatpush1.msra.mxu0 0.0
      %1249 = vmatprep.subr.mxu0 0.0
      %1250 = vmatpush1.msra.mxu0 0.0
      %1251 = vmatprep.subr.mxu0 0.0
      %1252 = vmatpush1.msra.mxu0 0.0
      %1253 = vmatprep.subr.mxu0 0.0
      %1254 = vmatpush1.msra.mxu0 0.0
      %1255 = vmatprep.subr.mxu0 0.0
      %1256 = vmatpush1.msra.mxu0 0.0
      %1257 = vmatprep.subr.mxu0 0.0
      %1258 = vmatpush1.msra.mxu0 0.0
      %1259 = vmatprep.subr.mxu0 0.0
      %1260 = vmatpush1.msra.mxu0 0.0
      %1261 = vmatprep.subr.mxu0 0.0
      %1262 = vmatpush1.msra.mxu0 0.0
      %1263 = vmatprep.subr.mxu0 0.0
      %1264 = vmatpush1.msra.mxu0 0.0
      %1265 = vmatprep.subr.mxu0 0.0
      %1266 = vmatpush1.msra.mxu0 0.0
      %1267 = vmatprep.subr.mxu0 0.0
      %1268 = vmatpush1.msra.mxu0 0.0
      %1269 = vmatprep.subr.mxu0 0.0
      %1270 = vmatpush1.msra.mxu0 0.0
      %1271 = vmatprep.subr.mxu0 0.0
      %1272 = vmatpush1.msra.mxu0 0.0
      %1273 = vmatprep.subr.mxu0 0.0
      %1274 = vmatpush1.msra.mxu0 0.0
      %1275 = vmatprep.subr.mxu0 0.0
      %1276 = vmatpush1.msra.mxu0 0.0
      %1277 = vmatprep.subr.mxu0 0.0
      %1278 = vmatpush1.msra.mxu0 0.0
      %1279 = vmatprep.subr.mxu0 0.0
      %1280 = vmatpush1.msra.mxu0 0.0
      %1281 = vmatprep.subr.mxu0 0.0
      %1282 = vmatpush1.msra.mxu0 0.0
      %1283 = vmatprep.subr.mxu0 0.0
      %1284 = vmatpush1.msra.mxu0 0.0
      %1285 = vmatprep.mubr.f32.mxu0 0.0
      %v1286 = vand.u32 %v1205, 4294901760
      %v1287 = vsub.f32 %v1205, %v1286
      %v1288 = vand.u32 %v1287, 4294901760
      %v1289 = vsub.f32 %v1287, %v1288
      %v1290 = vand.u32 %v1289, 4294901760
      %1291 = vmatmul.mubr.f32.gmra.mrb[0].mxu0 %v1290
      %v1292 = vpop.f32.mrb[0].mxu0
      %v1293 = vadd.f32 0.0, %v1292
      %v1294 = vpop.f32.mrb[0].mxu0
      %1295 = vmatprep.mubr.f32.mxu0 0.0
      %v1296 = vand.u32 %v1208, 4294901760
      %v1297 = vsub.f32 %v1208, %v1296
      %v1298 = vand.u32 %v1297, 4294901760
      %v1299 = vsub.f32 %v1297, %v1298
      %v1300 = vand.u32 %v1299, 4294901760
      %1301 = vmatmul.mubr.f32.gmra.mrb[0].mxu0 %v1300
      %v1302 = vpop.f32.mrb[0].mxu0
      %v1303 = vadd.f32 0.0, %v1302
      %v1304 = vpop.f32.mrb[0].mxu0
      %1305 = vdwg.mxu0
      %1306 = vmatprep.subr.mxu0 0.0
      %v1307 = vand.u32 %v1196, 4294901760
      %v1308 = vsub.f32 %v1196, %v1307
      %v1309 = vand.u32 %v1308, 4294901760
      %v1310 = vsub.f32 %v1308, %v1309
      %v1311 = vand.u32 %v1310, 4294901760
      %1312 = vmatpush1.msra.mxu0 %v1311
      %1313 = vmatprep.subr.mxu0 0.0
      %v1314 = vand.u32 %v1197, 4294901760
      %v1315 = vsub.f32 %v1197, %v1314
      %v1316 = vand.u32 %v1315, 4294901760
      %v1317 = vsub.f32 %v1315, %v1316
      %v1318 = vand.u32 %v1317, 4294901760
      %1319 = vmatpush1.msra.mxu0 %v1318
      %1320 = vmatprep.subr.mxu0 0.0
      %v1321 = vand.u32 %v1198, 4294901760
      %v1322 = vsub.f32 %v1198, %v1321
      %v1323 = vand.u32 %v1322, 4294901760
      %v1324 = vsub.f32 %v1322, %v1323
      %v1325 = vand.u32 %v1324, 4294901760
      %1326 = vmatpush1.msra.mxu0 %v1325
      %1327 = vmatprep.subr.mxu0 0.0
      %v1328 = vand.u32 %v1199, 4294901760
      %v1329 = vsub.f32 %v1199, %v1328
      %v1330 = vand.u32 %v1329, 4294901760
      %v1331 = vsub.f32 %v1329, %v1330
      %v1332 = vand.u32 %v1331, 4294901760
      %1333 = vmatpush1.msra.mxu0 %v1332
      %1334 = vmatprep.subr.mxu0 0.0
      %v1335 = vand.u32 %v1200, 4294901760
      %v1336 = vsub.f32 %v1200, %v1335
      %v1337 = vand.u32 %v1336, 4294901760
      %v1338 = vsub.f32 %v1336, %v1337
      %v1339 = vand.u32 %v1338, 4294901760
      %1340 = vmatpush1.msra.mxu0 %v1339
      %1341 = vmatprep.subr.mxu0 0.0
      %v1342 = vand.u32 %v1201, 4294901760
      %v1343 = vsub.f32 %v1201, %v1342
      %v1344 = vand.u32 %v1343, 4294901760
      %v1345 = vsub.f32 %v1343, %v1344
      %v1346 = vand.u32 %v1345, 4294901760
      %1347 = vmatpush1.msra.mxu0 %v1346
      %1348 = vmatprep.subr.mxu0 0.0
      %v1349 = vand.u32 %v1212, 4294901760
      %v1350 = vsub.f32 %v1212, %v1349
      %v1351 = vand.u32 %v1350, 4294901760
      %v1352 = vsub.f32 %v1350, %v1351
      %v1353 = vand.u32 %v1352, 4294901760
      %1354 = vmatpush1.msra.mxu0 %v1353
      %1355 = vmatprep.subr.mxu0 0.0
      %1356 = vmatpush1.msra.mxu0 0.0
      %1357 = vmatprep.subr.mxu0 0.0
      %1358 = vmatpush1.msra.mxu0 0.0
      %1359 = vmatprep.subr.mxu0 0.0
      %1360 = vmatpush1.msra.mxu0 0.0
      %1361 = vmatprep.subr.mxu0 0.0
      %1362 = vmatpush1.msra.mxu0 0.0
      %1363 = vmatprep.subr.mxu0 0.0
      %1364 = vmatpush1.msra.mxu0 0.0
      %1365 = vmatprep.subr.mxu0 0.0
      %1366 = vmatpush1.msra.mxu0 0.0
      %1367 = vmatprep.subr.mxu0 0.0
      %1368 = vmatpush1.msra.mxu0 0.0
      %1369 = vmatprep.subr.mxu0 0.0
      %1370 = vmatpush1.msra.mxu0 0.0
      %1371 = vmatprep.subr.mxu0 0.0
      %1372 = vmatpush1.msra.mxu0 0.0
      %1373 = vmatprep.subr.mxu0 0.0
      %1374 = vmatpush1.msra.mxu0 0.0
      %1375 = vmatprep.subr.mxu0 0.0
      %1376 = vmatpush1.msra.mxu0 0.0
      %1377 = vmatprep.subr.mxu0 0.0
      %1378 = vmatpush1.msra.mxu0 0.0
      %1379 = vmatprep.subr.mxu0 0.0
      %1380 = vmatpush1.msra.mxu0 0.0
      %1381 = vmatprep.subr.mxu0 0.0
      %1382 = vmatpush1.msra.mxu0 0.0
      %1383 = vmatprep.subr.mxu0 0.0
      %1384 = vmatpush1.msra.mxu0 0.0
      %1385 = vmatprep.subr.mxu0 0.0
      %1386 = vmatpush1.msra.mxu0 0.0
      %1387 = vmatprep.subr.mxu0 0.0
      %1388 = vmatpush1.msra.mxu0 0.0
      %1389 = vmatprep.subr.mxu0 0.0
      %1390 = vmatpush1.msra.mxu0 0.0
      %1391 = vmatprep.subr.mxu0 0.0
      %1392 = vmatpush1.msra.mxu0 0.0
      %1393 = vmatprep.subr.mxu0 0.0
      %1394 = vmatpush1.msra.mxu0 0.0
      %1395 = vmatprep.subr.mxu0 0.0
      %1396 = vmatpush1.msra.mxu0 0.0
      %1397 = vmatprep.subr.mxu0 0.0
      %1398 = vmatpush1.msra.mxu0 0.0
      %1399 = vmatprep.subr.mxu0 0.0
      %1400 = vmatpush1.msra.mxu0 0.0
      %1401 = vmatprep.subr.mxu0 0.0
      %1402 = vmatpush1.msra.mxu0 0.0
      %1403 = vmatprep.subr.mxu0 0.0
      %1404 = vmatpush1.msra.mxu0 0.0
      %1405 = vmatprep.mubr.f32.mxu0 0.0
      %v1406 = vand.u32 %v1205, 4294901760
      %1407 = vmatmul.mubr.f32.gmra.mrb[0].mxu0 %v1406
      %v1408 = vpop.f32.mrb[0].mxu0
      %v1409 = vadd.f32 %v1293, %v1408
      %v1410 = vpop.f32.mrb[0].mxu0
      %1411 = vmatprep.mubr.f32.mxu0 0.0
      %v1412 = vand.u32 %v1208, 4294901760
      %1413 = vmatmul.mubr.f32.gmra.mrb[0].mxu0 %v1412
      %v1414 = vpop.f32.mrb[0].mxu0
      %v1415 = vadd.f32 %v1303, %v1414
      %v1416 = vpop.f32.mrb[0].mxu0
      %1417 = vdwg.mxu0
      %1418 = vmatprep.subr.mxu0 0.0
      %v1419 = vand.u32 %v1196, 4294901760
      %v1420 = vsub.f32 %v1196, %v1419
      %1421 = vmatpush1.msra.mxu0 %v1420
      %1422 = vmatprep.subr.mxu0 0.0
      %v1423 = vand.u32 %v1197, 4294901760
      %v1424 = vsub.f32 %v1197, %v1423
      %1425 = vmatpush1.msra.mxu0 %v1424
      %1426 = vmatprep.subr.mxu0 0.0
      %v1427 = vand.u32 %v1198, 4294901760
      %v1428 = vsub.f32 %v1198, %v1427
      %1429 = vmatpush1.msra.mxu0 %v1428
      %1430 = vmatprep.subr.mxu0 0.0
      %v1431 = vand.u32 %v1199, 4294901760
      %v1432 = vsub.f32 %v1199, %v1431
      %1433 = vmatpush1.msra.mxu0 %v1432
      %1434 = vmatprep.subr.mxu0 0.0
      %v1435 = vand.u32 %v1200, 4294901760
      %v1436 = vsub.f32 %v1200, %v1435
      %1437 = vmatpush1.msra.mxu0 %v1436
      %1438 = vmatprep.subr.mxu0 0.0
      %v1439 = vand.u32 %v1201, 4294901760
      %v1440 = vsub.f32 %v1201, %v1439
      %1441 = vmatpush1.msra.mxu0 %v1440
      %1442 = vmatprep.subr.mxu0 0.0
      %v1443 = vand.u32 %v1212, 4294901760
      %v1444 = vsub.f32 %v1212, %v1443
      %1445 = vmatpush1.msra.mxu0 %v1444
      %1446 = vmatprep.subr.mxu0 0.0
      %1447 = vmatpush1.msra.mxu0 0.0
      %1448 = vmatprep.subr.mxu0 0.0
      %1449 = vmatpush1.msra.mxu0 0.0
      %1450 = vmatprep.subr.mxu0 0.0
      %1451 = vmatpush1.msra.mxu0 0.0
      %1452 = vmatprep.subr.mxu0 0.0
      %1453 = vmatpush1.msra.mxu0 0.0
      %1454 = vmatprep.subr.mxu0 0.0
      %1455 = vmatpush1.msra.mxu0 0.0
      %1456 = vmatprep.subr.mxu0 0.0
      %1457 = vmatpush1.msra.mxu0 0.0
      %1458 = vmatprep.subr.mxu0 0.0
      %1459 = vmatpush1.msra.mxu0 0.0
      %1460 = vmatprep.subr.mxu0 0.0
      %1461 = vmatpush1.msra.mxu0 0.0
      %1462 = vmatprep.subr.mxu0 0.0
      %1463 = vmatpush1.msra.mxu0 0.0
      %1464 = vmatprep.subr.mxu0 0.0
      %1465 = vmatpush1.msra.mxu0 0.0
      %1466 = vmatprep.subr.mxu0 0.0
      %1467 = vmatpush1.msra.mxu0 0.0
      %1468 = vmatprep.subr.mxu0 0.0
      %1469 = vmatpush1.msra.mxu0 0.0
      %1470 = vmatprep.subr.mxu0 0.0
      %1471 = vmatpush1.msra.mxu0 0.0
      %1472 = vmatprep.subr.mxu0 0.0
      %1473 = vmatpush1.msra.mxu0 0.0
      %1474 = vmatprep.subr.mxu0 0.0
      %1475 = vmatpush1.msra.mxu0 0.0
      %1476 = vmatprep.subr.mxu0 0.0
      %1477 = vmatpush1.msra.mxu0 0.0
      %1478 = vmatprep.subr.mxu0 0.0
      %1479 = vmatpush1.msra.mxu0 0.0
      %1480 = vmatprep.subr.mxu0 0.0
      %1481 = vmatpush1.msra.mxu0 0.0
      %1482 = vmatprep.subr.mxu0 0.0
      %1483 = vmatpush1.msra.mxu0 0.0
      %1484 = vmatprep.subr.mxu0 0.0
      %1485 = vmatpush1.msra.mxu0 0.0
      %1486 = vmatprep.subr.mxu0 0.0
      %1487 = vmatpush1.msra.mxu0 0.0
      %1488 = vmatprep.subr.mxu0 0.0
      %1489 = vmatpush1.msra.mxu0 0.0
      %1490 = vmatprep.subr.mxu0 0.0
      %1491 = vmatpush1.msra.mxu0 0.0
      %1492 = vmatprep.subr.mxu0 0.0
      %1493 = vmatpush1.msra.mxu0 0.0
      %1494 = vmatprep.subr.mxu0 0.0
      %1495 = vmatpush1.msra.mxu0 0.0
      %1496 = vmatprep.mubr.f32.mxu0 0.0
      %v1497 = vand.u32 %v1205, 4294901760
      %v1498 = vsub.f32 %v1205, %v1497
      %1499 = vmatmul.mubr.f32.gmra.mrb[0].mxu0 %v1498
      %v1500 = vpop.f32.mrb[0].mxu0
      %v1501 = vadd.f32 %v1409, %v1500
      %v1502 = vpop.f32.mrb[0].mxu0
      %1503 = vmatprep.mubr.f32.mxu0 0.0
      %v1504 = vand.u32 %v1208, 4294901760
      %v1505 = vsub.f32 %v1208, %v1504
      %1506 = vmatmul.mubr.f32.gmra.mrb[0].mxu0 %v1505
      %v1507 = vpop.f32.mrb[0].mxu0
      %v1508 = vadd.f32 %v1415, %v1507
      %v1509 = vpop.f32.mrb[0].mxu0
      %1510 = vdwg.mxu0
      %1511 = vmatprep.subr.mxu0 0.0
      %v1512 = vand.u32 %v1196, 4294901760
      %1513 = vmatpush1.msra.mxu0 %v1512
      %1514 = vmatprep.subr.mxu0 0.0
      %v1515 = vand.u32 %v1197, 4294901760
      %1516 = vmatpush1.msra.mxu0 %v1515
      %1517 = vmatprep.subr.mxu0 0.0
      %v1518 = vand.u32 %v1198, 4294901760
      %1519 = vmatpush1.msra.mxu0 %v1518
      %1520 = vmatprep.subr.mxu0 0.0
      %v1521 = vand.u32 %v1199, 4294901760
      %1522 = vmatpush1.msra.mxu0 %v1521
      %1523 = vmatprep.subr.mxu0 0.0
      %v1524 = vand.u32 %v1200, 4294901760
      %1525 = vmatpush1.msra.mxu0 %v1524
      %1526 = vmatprep.subr.mxu0 0.0
      %v1527 = vand.u32 %v1201, 4294901760
      %1528 = vmatpush1.msra.mxu0 %v1527
      %1529 = vmatprep.subr.mxu0 0.0
      %v1530 = vand.u32 %v1212, 4294901760
      %1531 = vmatpush1.msra.mxu0 %v1530
      %1532 = vmatprep.subr.mxu0 0.0
      %1533 = vmatpush1.msra.mxu0 0.0
      %1534 = vmatprep.subr.mxu0 0.0
      %1535 = vmatpush1.msra.mxu0 0.0
      %1536 = vmatprep.subr.mxu0 0.0
      %1537 = vmatpush1.msra.mxu0 0.0
      %1538 = vmatprep.subr.mxu0 0.0
      %1539 = vmatpush1.msra.mxu0 0.0
      %1540 = vmatprep.subr.mxu0 0.0
      %1541 = vmatpush1.msra.mxu0 0.0
      %1542 = vmatprep.subr.mxu0 0.0
      %1543 = vmatpush1.msra.mxu0 0.0
      %1544 = vmatprep.subr.mxu0 0.0
      %1545 = vmatpush1.msra.mxu0 0.0
      %1546 = vmatprep.subr.mxu0 0.0
      %1547 = vmatpush1.msra.mxu0 0.0
      %1548 = vmatprep.subr.mxu0 0.0
      %1549 = vmatpush1.msra.mxu0 0.0
      %1550 = vmatprep.subr.mxu0 0.0
      %1551 = vmatpush1.msra.mxu0 0.0
      %1552 = vmatprep.subr.mxu0 0.0
      %1553 = vmatpush1.msra.mxu0 0.0
      %1554 = vmatprep.subr.mxu0 0.0
      %1555 = vmatpush1.msra.mxu0 0.0
      %1556 = vmatprep.subr.mxu0 0.0
      %1557 = vmatpush1.msra.mxu0 0.0
      %1558 = vmatprep.subr.mxu0 0.0
      %1559 = vmatpush1.msra.mxu0 0.0
      %1560 = vmatprep.subr.mxu0 0.0
      %1561 = vmatpush1.msra.mxu0 0.0
      %1562 = vmatprep.subr.mxu0 0.0
      %1563 = vmatpush1.msra.mxu0 0.0
      %1564 = vmatprep.subr.mxu0 0.0
      %1565 = vmatpush1.msra.mxu0 0.0
      %1566 = vmatprep.subr.mxu0 0.0
      %1567 = vmatpush1.msra.mxu0 0.0
      %1568 = vmatprep.subr.mxu0 0.0
      %1569 = vmatpush1.msra.mxu0 0.0
      %1570 = vmatprep.subr.mxu0 0.0
      %1571 = vmatpush1.msra.mxu0 0.0
      %1572 = vmatprep.subr.mxu0 0.0
      %1573 = vmatpush1.msra.mxu0 0.0
      %1574 = vmatprep.subr.mxu0 0.0
      %1575 = vmatpush1.msra.mxu0 0.0
      %1576 = vmatprep.subr.mxu0 0.0
      %1577 = vmatpush1.msra.mxu0 0.0
      %1578 = vmatprep.subr.mxu0 0.0
      %1579 = vmatpush1.msra.mxu0 0.0
      %1580 = vmatprep.subr.mxu0 0.0
      %1581 = vmatpush1.msra.mxu0 0.0
      %1582 = vmatprep.mubr.f32.mxu0 0.0
      %v1583 = vand.u32 %v1205, 4294901760
      %v1584 = vsub.f32 %v1205, %v1583
      %v1585 = vand.u32 %v1584, 4294901760
      %1586 = vmatmul.mubr.f32.gmra.mrb[0].mxu0 %v1585
      %v1587 = vpop.f32.mrb[0].mxu0
      %v1588 = vadd.f32 %v1501, %v1587
      %v1589 = vpop.f32.mrb[0].mxu0
      %1590 = vmatprep.mubr.f32.mxu0 0.0
      %v1591 = vand.u32 %v1208, 4294901760
      %v1592 = vsub.f32 %v1208, %v1591
      %v1593 = vand.u32 %v1592, 4294901760
      %1594 = vmatmul.mubr.f32.gmra.mrb[0].mxu0 %v1593
      %v1595 = vpop.f32.mrb[0].mxu0
      %v1596 = vadd.f32 %v1508, %v1595
      %v1597 = vpop.f32.mrb[0].mxu0
      %1598 = vdwg.mxu0
      %1599 = vmatprep.subr.mxu0 0.0
      %v1600 = vand.u32 %v1196, 4294901760
      %v1601 = vsub.f32 %v1196, %v1600
      %v1602 = vand.u32 %v1601, 4294901760
      %1603 = vmatpush1.msra.mxu0 %v1602
      %1604 = vmatprep.subr.mxu0 0.0
      %v1605 = vand.u32 %v1197, 4294901760
      %v1606 = vsub.f32 %v1197, %v1605
      %v1607 = vand.u32 %v1606, 4294901760
      %1608 = vmatpush1.msra.mxu0 %v1607
      %1609 = vmatprep.subr.mxu0 0.0
      %v1610 = vand.u32 %v1198, 4294901760
      %v1611 = vsub.f32 %v1198, %v1610
      %v1612 = vand.u32 %v1611, 4294901760
      %1613 = vmatpush1.msra.mxu0 %v1612
      %1614 = vmatprep.subr.mxu0 0.0
      %v1615 = vand.u32 %v1199, 4294901760
      %v1616 = vsub.f32 %v1199, %v1615
      %v1617 = vand.u32 %v1616, 4294901760
      %1618 = vmatpush1.msra.mxu0 %v1617
      %1619 = vmatprep.subr.mxu0 0.0
      %v1620 = vand.u32 %v1200, 4294901760
      %v1621 = vsub.f32 %v1200, %v1620
      %v1622 = vand.u32 %v1621, 4294901760
      %1623 = vmatpush1.msra.mxu0 %v1622
      %1624 = vmatprep.subr.mxu0 0.0
      %v1625 = vand.u32 %v1201, 4294901760
      %v1626 = vsub.f32 %v1201, %v1625
      %v1627 = vand.u32 %v1626, 4294901760
      %1628 = vmatpush1.msra.mxu0 %v1627
      %1629 = vmatprep.subr.mxu0 0.0
      %v1630 = vand.u32 %v1212, 4294901760
      %v1631 = vsub.f32 %v1212, %v1630
      %v1632 = vand.u32 %v1631, 4294901760
      %1633 = vmatpush1.msra.mxu0 %v1632
      %1634 = vmatprep.subr.mxu0 0.0
      %1635 = vmatpush1.msra.mxu0 0.0
      %1636 = vmatprep.subr.mxu0 0.0
      %1637 = vmatpush1.msra.mxu0 0.0
      %1638 = vmatprep.subr.mxu0 0.0
      %1639 = vmatpush1.msra.mxu0 0.0
      %1640 = vmatprep.subr.mxu0 0.0
      %1641 = vmatpush1.msra.mxu0 0.0
      %1642 = vmatprep.subr.mxu0 0.0
      %1643 = vmatpush1.msra.mxu0 0.0
      %1644 = vmatprep.subr.mxu0 0.0
      %1645 = vmatpush1.msra.mxu0 0.0
      %1646 = vmatprep.subr.mxu0 0.0
      %1647 = vmatpush1.msra.mxu0 0.0
      %1648 = vmatprep.subr.mxu0 0.0
      %1649 = vmatpush1.msra.mxu0 0.0
      %1650 = vmatprep.subr.mxu0 0.0
      %1651 = vmatpush1.msra.mxu0 0.0
      %1652 = vmatprep.subr.mxu0 0.0
      %1653 = vmatpush1.msra.mxu0 0.0
      %1654 = vmatprep.subr.mxu0 0.0
      %1655 = vmatpush1.msra.mxu0 0.0
      %1656 = vmatprep.subr.mxu0 0.0
      %1657 = vmatpush1.msra.mxu0 0.0
      %1658 = vmatprep.subr.mxu0 0.0
      %1659 = vmatpush1.msra.mxu0 0.0
      %1660 = vmatprep.subr.mxu0 0.0
      %1661 = vmatpush1.msra.mxu0 0.0
      %1662 = vmatprep.subr.mxu0 0.0
      %1663 = vmatpush1.msra.mxu0 0.0
      %1664 = vmatprep.subr.mxu0 0.0
      %1665 = vmatpush1.msra.mxu0 0.0
      %1666 = vmatprep.subr.mxu0 0.0
      %1667 = vmatpush1.msra.mxu0 0.0
      %1668 = vmatprep.subr.mxu0 0.0
      %1669 = vmatpush1.msra.mxu0 0.0
      %1670 = vmatprep.subr.mxu0 0.0
      %1671 = vmatpush1.msra.mxu0 0.0
      %1672 = vmatprep.subr.mxu0 0.0
      %1673 = vmatpush1.msra.mxu0 0.0
      %1674 = vmatprep.subr.mxu0 0.0
      %1675 = vmatpush1.msra.mxu0 0.0
      %1676 = vmatprep.subr.mxu0 0.0
      %1677 = vmatpush1.msra.mxu0 0.0
      %1678 = vmatprep.subr.mxu0 0.0
      %1679 = vmatpush1.msra.mxu0 0.0
      %1680 = vmatprep.subr.mxu0 0.0
      %1681 = vmatpush1.msra.mxu0 0.0
      %1682 = vmatprep.subr.mxu0 0.0
      %1683 = vmatpush1.msra.mxu0 0.0
      %1684 = vmatprep.mubr.f32.mxu0 0.0
      %v1685 = vand.u32 %v1205, 4294901760
      %1686 = vmatmul.mubr.f32.gmra.mrb[0].mxu0 %v1685
      %v1687 = vpop.f32.mrb[0].mxu0
      %v1688 = vadd.f32 %v1588, %v1687
      %v1689 = vpop.f32.mrb[0].mxu0
      %1690 = vmatprep.mubr.f32.mxu0 0.0
      %v1691 = vand.u32 %v1208, 4294901760
      %1692 = vmatmul.mubr.f32.gmra.mrb[0].mxu0 %v1691
      %v1693 = vpop.f32.mrb[0].mxu0
      %v1694 = vadd.f32 %v1596, %v1693
      %v1695 = vpop.f32.mrb[0].mxu0
      %1696 = vdwg.mxu0
      %1697 = vmatprep.subr.mxu0 0.0
      %v1698 = vand.u32 %v1196, 4294901760
      %1699 = vmatpush1.msra.mxu0 %v1698
      %1700 = vmatprep.subr.mxu0 0.0
      %v1701 = vand.u32 %v1197, 4294901760
      %1702 = vmatpush1.msra.mxu0 %v1701
      %1703 = vmatprep.subr.mxu0 0.0
      %v1704 = vand.u32 %v1198, 4294901760
      %1705 = vmatpush1.msra.mxu0 %v1704
      %1706 = vmatprep.subr.mxu0 0.0
      %v1707 = vand.u32 %v1199, 4294901760
      %1708 = vmatpush1.msra.mxu0 %v1707
      %1709 = vmatprep.subr.mxu0 0.0
      %v1710 = vand.u32 %v1200, 4294901760
      %1711 = vmatpush1.msra.mxu0 %v1710
      %1712 = vmatprep.subr.mxu0 0.0
      %v1713 = vand.u32 %v1201, 4294901760
      %1714 = vmatpush1.msra.mxu0 %v1713
      %1715 = vmatprep.subr.mxu0 0.0
      %v1716 = vand.u32 %v1212, 4294901760
      %1717 = vmatpush1.msra.mxu0 %v1716
      %1718 = vmatprep.subr.mxu0 0.0
      %1719 = vmatpush1.msra.mxu0 0.0
      %1720 = vmatprep.subr.mxu0 0.0
      %1721 = vmatpush1.msra.mxu0 0.0
      %1722 = vmatprep.subr.mxu0 0.0
      %1723 = vmatpush1.msra.mxu0 0.0
      %1724 = vmatprep.subr.mxu0 0.0
      %1725 = vmatpush1.msra.mxu0 0.0
      %1726 = vmatprep.subr.mxu0 0.0
      %1727 = vmatpush1.msra.mxu0 0.0
      %1728 = vmatprep.subr.mxu0 0.0
      %1729 = vmatpush1.msra.mxu0 0.0
      %1730 = vmatprep.subr.mxu0 0.0
      %1731 = vmatpush1.msra.mxu0 0.0
      %1732 = vmatprep.subr.mxu0 0.0
      %1733 = vmatpush1.msra.mxu0 0.0
      %1734 = vmatprep.subr.mxu0 0.0
      %1735 = vmatpush1.msra.mxu0 0.0
      %1736 = vmatprep.subr.mxu0 0.0
      %1737 = vmatpush1.msra.mxu0 0.0
      %1738 = vmatprep.subr.mxu0 0.0
      %1739 = vmatpush1.msra.mxu0 0.0
      %1740 = vmatprep.subr.mxu0 0.0
      %1741 = vmatpush1.msra.mxu0 0.0
      %1742 = vmatprep.subr.mxu0 0.0
      %1743 = vmatpush1.msra.mxu0 0.0
      %1744 = vmatprep.subr.mxu0 0.0
      %1745 = vmatpush1.msra.mxu0 0.0
      %1746 = vmatprep.subr.mxu0 0.0
      %1747 = vmatpush1.msra.mxu0 0.0
      %1748 = vmatprep.subr.mxu0 0.0
      %1749 = vmatpush1.msra.mxu0 0.0
      %1750 = vmatprep.subr.mxu0 0.0
      %1751 = vmatpush1.msra.mxu0 0.0
      %1752 = vmatprep.subr.mxu0 0.0
      %1753 = vmatpush1.msra.mxu0 0.0
      %1754 = vmatprep.subr.mxu0 0.0
      %1755 = vmatpush1.msra.mxu0 0.0
      %1756 = vmatprep.subr.mxu0 0.0
      %1757 = vmatpush1.msra.mxu0 0.0
      %1758 = vmatprep.subr.mxu0 0.0
      %1759 = vmatpush1.msra.mxu0 0.0
      %1760 = vmatprep.subr.mxu0 0.0
      %1761 = vmatpush1.msra.mxu0 0.0
      %1762 = vmatprep.subr.mxu0 0.0
      %1763 = vmatpush1.msra.mxu0 0.0
      %1764 = vmatprep.subr.mxu0 0.0
      %1765 = vmatpush1.msra.mxu0 0.0
      %1766 = vmatprep.subr.mxu0 0.0
      %1767 = vmatpush1.msra.mxu0 0.0
      %1768 = vmatprep.mubr.f32.mxu0 0.0
      %v1769 = vand.u32 %v1205, 4294901760
      %1770 = vmatmul.mubr.f32.gmra.mrb[0].mxu0 %v1769
      %v1771 = vpop.f32.mrb[0].mxu0
      %v1772 = vadd.f32 %v1688, %v1771
      %v1773 = vpop.f32.mrb[0].mxu0
      %1774 = vmatprep.mubr.f32.mxu0 0.0
      %v1775 = vand.u32 %v1208, 4294901760
      %1776 = vmatmul.mubr.f32.gmra.mrb[0].mxu0 %v1775
      %v1777 = vpop.f32.mrb[0].mxu0
      %v1778 = vadd.f32 %v1694, %v1777
      %v1779 = vpop.f32.mrb[0].mxu0
      %1780 = vdwg.mxu0
      %vm1781 = vcmask 105472
      %1782 = vst.msk [vmem:[%s288] sm:$0xff] %vm1781, %v1772
      %1783 = vst.msk [vmem:[%s288 + $0x8] sm:$0xff] %vm1781, %v1778
      %p1784 = scmp.lt.s32.totalorder %s21, 1
      %s1785 = scalar_select %p1784, %s21, 1
      %p1786 = scmp.lt.s32.totalorder %s22, 0
      %s1787 = scalar_select %p1786, %s22, 0
      %s1788 = smul.addr %s1787, 2
      %s1789 = smul.addr %s1785, 2
      %s1790 = sadd.s32 %s1788, %s1789
      %s1791 = smul.addr %s1790, 8
      %s1792 = scalar_lea.vmem %s6, %s1791
      // Predicated region
      $region45: #{_lambda_.1} parent=43 // pred_check
        %p1793 = pneg %p184
      $region46: #{_lambda_.1} parent=43 // pred_check_branch
        %1795 = sbr.rel (%p1793) target = $region48
      $region47: #{_lambda_.1} parent=43 // pred_region
        _
      $region48: #{_lambda_.1} parent=43 // pred_fallthru
        _
    $region44: #{_lambda_.1} parent=5 // pred_fallthru
      _
    %p1796 = scmp.le.s32.totalorder 2, %s12
    // Predicated region
    $region49: #{_lambda_.1} parent=5 // pred_check
      %p1797 = pneg %p1796
    $region50: #{_lambda_.1} parent=5 // pred_check_branch
      %1799 = sbr.rel (%p1797) target = $region52
    $region51: #{_lambda_.1} parent=5 // pred_region
      %s1800 = ssub.s32 %s12, 2
      // Predicated region
      $region53: #{_lambda_.1} parent=51 // pred_check
        %p1801 = pneg %p190
      $region54: #{_lambda_.1} parent=51 // pred_check_branch
        %1803 = sbr.rel (%p1801) target = $region56
      $region55: #{_lambda_.1} parent=51 // pred_region
        %p1804 = scmp.lt.s32.totalorder %s23, 1
        %s1805 = scalar_select %p1804, %s23, 1
        %p1806 = scmp.lt.s32.totalorder %s24, 0
        %s1807 = scalar_select %p1806, %s24, 0
        %s1808 = smul.addr %s1807, 2
        %s1809 = smul.addr %s1805, 2
        %s1810 = sadd.s32 %s1808, %s1809
        %s1811 = smul.addr %s1810, 8
        %s1812 = scalar_lea.vmem %s6, %s1811
      $region56: #{_lambda_.1} parent=51 // pred_fallthru
        _
    $region52: #{_lambda_.1} parent=5 // pred_fallthru
      _
  $region6: #{_lambda_.1} parent=0 // loop_footer
    %s16 = sadd.s32 1, %s12
  $region7: #{_lambda_.1} parent=0 // loop_footer_branch
    %11 = sbr.rel target = $region3
  $region8: #{_lambda_.1} parent=0 // loop_exit
    _

</llo_original>
